<compile_context>
chip_gen: v5e
topology: v5e:2x2
jax: 0.10.0
libtpu: 0.0.40
codegen_flags: <defaults>
</compile_context>

<pallas_src>
import functools

import numpy as np
import jax
import jax.numpy as jnp
from jax.experimental import pallas as pl
from jax.experimental.pallas import tpu as pltpu


def _round_up(x, m):
    return (x + m - 1) // m * m


def _sinegen_kernel(f0_ref, mult_ref, rand_ref, tri_ref, *rest,
                    inv_sr, sine_amp, has_noise, n_sub, ts):
    if has_noise:
        noise_ref, out_ref, carry_ref = rest
    else:
        noise_ref = None
        out_ref, carry_ref = rest

    t = pl.program_id(2)

    # Re-initialise the running base phase at the first time block of every
    # (harmonic-group, row-tile) pass.
    @pl.when(t == 0)
    def _():
        carry_ref[...] = jnp.zeros_like(carry_ref)

    carry = carry_ref[...]            # (rtb, 1)  running base phase (mod 1)
    mult = mult_ref[...]              # (hpg, rtb, 1)  harmonic multipliers h+1
    rand = rand_ref[...]              # (hpg, rtb, 1)  random initial phases
    tri = tri_ref[...]                # (ts, ts)   upper-triangular ones
    two_pi = jnp.float32(2.0 * np.pi)

    # Two-level cumulative sum over time: K sub-tiles of `ts` lanes per grid
    # step, carrying the base phase locally between sub-tiles.
    for j in range(n_sub):
        lo, hi = j * ts, (j + 1) * ts
        # rad = f0 / sampling_rate (no mod: integer phase vanishes under sin).
        rad = f0_ref[:, lo:hi] * jnp.float32(inv_sr)               # (rtb, ts)
        cum = jnp.dot(rad, tri,
                      precision=jax.lax.Precision.HIGHEST,
                      preferred_element_type=jnp.float32)          # (rtb, ts)
        phase = carry + cum                                        # (rtb, ts)
        # Harmonic expansion on the VPU: (h+1) * base_phase + rand_ini.
        full = mult * phase[None, :, :] + rand                     # (hpg,rtb,ts)
        s = jnp.sin(full * two_pi) * jnp.float32(sine_amp)
        if noise_ref is not None:
            s = s + noise_ref[:, :, lo:hi]
        out_ref[:, :, lo:hi] = s
        # mod 1 keeps the carry small (f32-safe for arbitrarily long audio);
        # the dropped integer is cancelled by the integer harmonic multiplier.
        carry = jnp.mod(phase[:, -1:], 1.0)

    carry_ref[...] = carry


def sine_gen(f0, rand_ini, *, sampling_rate, harmonic_num, sine_amp=0.1,
             noise_std=0.003, noise_key=None,
             sub_tile=256, subtiles_per_block=8, row_tile=8):
    """f0: (B, L, 1) f32 (0 for unvoiced).  rand_ini: (B, dim) in [0, 1) with
    column 0 zeroed.  Returns sine_waves: (B, L, dim) f32."""
    B, L, _ = f0.shape
    dim = harmonic_num + 1

    # Row (batch) tiling, clamped to the real batch; multiple of 8 sublanes.
    rtb = min(_round_up(max(row_tile, 1), 8), _round_up(B, 8))
    nr = -(-B // rtb)
    B_pad = nr * rtb

    # Harmonic grouping: >=2 parallel tiles when dim is even (v7x has 2 TCs).
    hpg = dim // 2 if (dim > 1 and dim % 2 == 0) else dim
    nh = dim // hpg

    # Time tiling: K sub-tiles of TS lanes per grid step.
    TS = _round_up(sub_tile, 128)
    TL = min(TS * max(subtiles_per_block, 1), _round_up(L, TS))
    K = TL // TS
    L_pad = _round_up(L, TL)
    nt = L_pad // TL

    # Host-side constants (DMA'd once; block index never changes).
    tri = jnp.asarray(np.triu(np.ones((TS, TS), np.float32)))   # tri[s,t]=(s<=t)
    mult = jnp.asarray(
        np.broadcast_to(np.arange(1, dim + 1, dtype=np.float32)[:, None, None],
                        (dim, B_pad, 1)).copy())

    # Padded inputs (only the (B, L) base f0 is streamed, not dim copies).
    f0_p = jnp.pad(f0[:, :, 0].astype(jnp.float32),
                   ((0, B_pad - B), (0, L_pad - L)))
    rand_p = jnp.pad(jnp.transpose(rand_ini.astype(jnp.float32))[:, :, None],
                     ((0, 0), (0, B_pad - B), (0, 0)))           # (dim,B_pad,1)

    has_noise = float(noise_std) != 0.0
    args = [f0_p, mult, rand_p, tri]
    in_specs = [
        pl.BlockSpec((rtb, TL), lambda g, i, t: (i, t)),            # base f0
        pl.BlockSpec((hpg, rtb, 1), lambda g, i, t: (g, i, 0)),     # h+1
        pl.BlockSpec((hpg, rtb, 1), lambda g, i, t: (g, i, 0)),     # rand_ini
        pl.BlockSpec((TS, TS), lambda g, i, t: (0, 0)),             # triangular
    ]
    if has_noise:
        # TODO(synk): torch.randn cannot be bit-reproduced; an equivalent
        # Gaussian dither is drawn host-side and streamed into the kernel
        # (in-kernel pltpu.prng_* has no interpret-mode lowering).
        key = noise_key if noise_key is not None else jax.random.PRNGKey(0)
        noise = jnp.float32(noise_std) * jax.random.normal(
            key, (dim, B_pad, L_pad), jnp.float32)
        args.append(noise)
        in_specs.append(pl.BlockSpec((hpg, rtb, TL), lambda g, i, t: (g, i, t)))

    kernel = functools.partial(
        _sinegen_kernel, inv_sr=1.0 / float(sampling_rate),
        sine_amp=float(sine_amp), has_noise=has_noise, n_sub=K, ts=TS)

    out_p = pl.pallas_call(
        kernel,
        out_shape=jax.ShapeDtypeStruct((dim, B_pad, L_pad), jnp.float32),
        grid_spec=pltpu.PrefetchScalarGridSpec(
            num_scalar_prefetch=0,
            grid=(nh, nr, nt),
            in_specs=in_specs,
            out_specs=pl.BlockSpec((hpg, rtb, TL), lambda g, i, t: (g, i, t)),
            scratch_shapes=[pltpu.VMEM((rtb, 1), jnp.float32)],   # phase carry
        ),
        compiler_params=pltpu.CompilerParams(
            dimension_semantics=("parallel", "parallel", "arbitrary")),
    )(*args)

    # TODO(synk): this final XLA transpose exists only for parity with the
    # PyTorch (B, L, dim) layout; consumers that accept (dim, B, L) or fuse the
    # downstream NSF harmonic merge should take out_p[:, :B, :L] directly.
    return jnp.transpose(out_p[:, :B, :L], (1, 2, 0))


def _sine_ref_jax(f0, rand_ini, sampling_rate, harmonic_num, sine_amp):
    """Pure-JAX transcription of SineGen._f02sine * sine_amp (noise-free)."""
    dim = harmonic_num + 1
    mult = jnp.arange(1, dim + 1, dtype=jnp.float32)
    f0_buf = f0[:, :, 0:1].astype(jnp.float32) * mult[None, None, :]
    rad = jnp.mod(f0_buf / sampling_rate, 1.0)
    rad = rad.at[:, 0, :].add(rand_ini)
    tmp_over_one = jnp.mod(jnp.cumsum(rad, axis=1), 1.0)
    idx = (tmp_over_one[:, 1:, :] - tmp_over_one[:, :-1, :]) < 0
    shift = jnp.zeros_like(rad).at[:, 1:, :].set(idx * (-1.0))
    return jnp.sin(jnp.cumsum(rad + shift, axis=1) * (2.0 * np.pi)) * sine_amp


if __name__ == "__main__":
    key = jax.random.PRNGKey(0)
    B, L = 2, 64
    harmonic_num = 3
    dim = harmonic_num + 1
    samp_rate = 16000.0

    k1, k2, k3 = jax.random.split(key, 3)
    f0 = jax.random.uniform(k1, (B, L, 1), jnp.float32, 80.0, 400.0)
    rand_ini = jax.random.uniform(k2, (B, dim), jnp.float32)
    rand_ini = rand_ini.at[:, 0].set(0.0)

    sine_waves = sine_gen(f0, rand_ini, sampling_rate=samp_rate,
                          harmonic_num=harmonic_num, sine_amp=0.1,
                          noise_std=0.003, noise_key=k3)
    jax.block_until_ready(sine_waves)
    assert sine_waves.shape == (B, L, dim)
    assert sine_waves.dtype == jnp.float32

    # Noise-free correctness check against a pure-JAX transcription of the
    # PyTorch reference (HIGHEST-precision cumsum matmul -> tight tolerance).
    got = sine_gen(f0, rand_ini, sampling_rate=samp_rate,
                   harmonic_num=harmonic_num, sine_amp=0.1, noise_std=0.0)
    want = _sine_ref_jax(f0, rand_ini, samp_rate, harmonic_num, 0.1)
    err = float(jnp.max(jnp.abs(got - want)))
    assert err < 5e-3, err

    print("KERNEL_OK")
</pallas_src>

<mosaic_0001>
module attributes {stable_mosaic.version = 11 : i64} {
  func.func @_sinegen_kernel(%arg0: i32, %arg1: i32, %arg2: i32, %arg3: memref<8x256xf32, #tpu.memory_space<vmem>>, %arg4: memref<2x8x1xf32, #tpu.memory_space<vmem>>, %arg5: memref<2x8x1xf32, #tpu.memory_space<vmem>>, %arg6: memref<256x256xf32, #tpu.memory_space<vmem>>, %arg7: memref<2x8x256xf32, #tpu.memory_space<vmem>>, %arg8: memref<2x8x256xf32, #tpu.memory_space<vmem>>, %arg9: memref<8x1xf32, #tpu.memory_space<vmem>>) attributes {dimension_semantics = [#tpu.dimension_semantics<parallel>, #tpu.dimension_semantics<parallel>, #tpu.dimension_semantics<arbitrary>], iteration_bounds = array<i64: 2, 1, 1>, scalar_prefetch = 0 : i64, scratch_operands = 1 : i64, tpu.core_type = #tpu.core_type<tc>, window_params = [{transform_indices = @transform_0, window_bounds = array<i64: 8, 256>}, {transform_indices = @transform_1, window_bounds = array<i64: 2, 8, 1>}, {transform_indices = @transform_2, window_bounds = array<i64: 2, 8, 1>}, {pipeline_mode = #tpu.pipeline_mode<synchronous>, transform_indices = @transform_3, window_bounds = array<i64: 256, 256>}, {transform_indices = @transform_4, window_bounds = array<i64: 2, 8, 256>}, {transform_indices = @transform_5, window_bounds = array<i64: 2, 8, 256>}]} {
    %c0_i32 = arith.constant 0 : i32
    %0 = arith.cmpi eq, %arg2, %c0_i32 : i32
    %1 = arith.extui %0 : i1 to i32
    %c0_i32_0 = arith.constant 0 : i32
    %2 = arith.cmpi ne, %1, %c0_i32_0 : i32
    scf.if %2 {
      %cst_27 = arith.constant 0.000000e+00 : f32
      %43 = vector.broadcast %cst_27 : f32 to vector<8x1xf32>
      %c0_28 = arith.constant 0 : index
      %c0_29 = arith.constant 0 : index
      %44 = vector.load %arg9[%c0_28, %c0_29] : memref<8x1xf32, #tpu.memory_space<vmem>>, vector<8x1xf32>
      tpu.vector_store %arg9[%c0_28, %c0_29], %43 {strides = array<i32>} : memref<8x1xf32, #tpu.memory_space<vmem>>, vector<8x1xf32>,
    } else {
    }
    %c0 = arith.constant 0 : index
    %c0_1 = arith.constant 0 : index
    %3 = vector.load %arg9[%c0, %c0_1] : memref<8x1xf32, #tpu.memory_space<vmem>>, vector<8x1xf32>
    %c0_2 = arith.constant 0 : index
    %c0_3 = arith.constant 0 : index
    %c0_4 = arith.constant 0 : index
    %4 = vector.load %arg4[%c0_2, %c0_3, %c0_4] : memref<2x8x1xf32, #tpu.memory_space<vmem>>, vector<2x8x1xf32>
    %c0_5 = arith.constant 0 : index
    %c0_6 = arith.constant 0 : index
    %c0_7 = arith.constant 0 : index
    %5 = vector.load %arg5[%c0_5, %c0_6, %c0_7] : memref<2x8x1xf32, #tpu.memory_space<vmem>>, vector<2x8x1xf32>
    %c0_8 = arith.constant 0 : index
    %c0_9 = arith.constant 0 : index
    %6 = vector.load %arg6[%c0_8, %c0_9] : memref<256x256xf32, #tpu.memory_space<vmem>>, vector<256x256xf32>
    %c0_10 = arith.constant 0 : index
    %c0_11 = arith.constant 0 : index
    %7 = vector.load %arg3[%c0_10, %c0_11] : memref<8x256xf32, #tpu.memory_space<vmem>>, vector<8x256xf32>
    %cst = arith.constant 6.250000e-05 : f32
    %8 = vector.broadcast %cst : f32 to vector<8x256xf32>
    %9 = arith.mulf %7, %8 : vector<8x256xf32>
    %cst_12 = arith.constant dense<0.000000e+00> : vector<8x256xf32>
    %10 = tpu.matmul %9, %6, %cst_12 {dimension_numbers = #tpu.dot_dimension_numbers<[1], [0], [0], [1], [0, 0, 1, 1], [], []>, precision = #tpu.contract_precision<fp32>} : vector<8x256xf32>, vector<256x256xf32>, vector<8x256xf32> -> vector<8x256xf32>
    %11 = vector.broadcast %3 : vector<8x1xf32> to vector<8x256xf32>
    %12 = arith.addf %11, %10 : vector<8x256xf32>
    %13 = vector.shape_cast %12 : vector<8x256xf32> to vector<1x8x256xf32>
    %14 = vector.broadcast %4 : vector<2x8x1xf32> to vector<2x8x256xf32>
    %15 = vector.broadcast %13 : vector<1x8x256xf32> to vector<2x8x256xf32>
    %16 = arith.mulf %14, %15 : vector<2x8x256xf32>
    %17 = vector.broadcast %5 : vector<2x8x1xf32> to vector<2x8x256xf32>
    %18 = arith.addf %16, %17 : vector<2x8x256xf32>
    %cst_13 = arith.constant 6.28318548 : f32
    %19 = vector.broadcast %cst_13 : f32 to vector<2x8x256xf32>
    %20 = arith.mulf %18, %19 : vector<2x8x256xf32>
    %21 = math.sin %20 : vector<2x8x256xf32>
    %cst_14 = arith.constant 1.000000e-01 : f32
    %22 = vector.broadcast %cst_14 : f32 to vector<2x8x256xf32>
    %23 = arith.mulf %21, %22 : vector<2x8x256xf32>
    %c0_15 = arith.constant 0 : index
    %c0_16 = arith.constant 0 : index
    %c0_17 = arith.constant 0 : index
    %24 = vector.load %arg7[%c0_15, %c0_16, %c0_17] : memref<2x8x256xf32, #tpu.memory_space<vmem>>, vector<2x8x256xf32>
    %25 = arith.addf %23, %24 : vector<2x8x256xf32>
    %c0_18 = arith.constant 0 : index
    %c0_19 = arith.constant 0 : index
    %c0_20 = arith.constant 0 : index
    %26 = vector.load %arg8[%c0_18, %c0_19, %c0_20] : memref<2x8x256xf32, #tpu.memory_space<vmem>>, vector<2x8x256xf32>
    tpu.vector_store %arg8[%c0_18, %c0_19, %c0_20], %25 {strides = array<i32>} : memref<2x8x256xf32, #tpu.memory_space<vmem>>, vector<2x8x256xf32>,
    %27 = vector.extract_strided_slice %12 {offsets = [0, 255], sizes = [8, 1], strides = [1, 1]} : vector<8x256xf32> to vector<8x1xf32>
    %cst_21 = arith.constant 1.000000e+00 : f32
    %28 = vector.broadcast %cst_21 : f32 to vector<8x1xf32>
    %29 = arith.remf %27, %28 : vector<8x1xf32>
    %cst_22 = arith.constant 0.000000e+00 : f32
    %30 = vector.broadcast %cst_22 : f32 to vector<8x1xf32>
    %31 = arith.cmpf one, %29, %30 : vector<8x1xf32>
    %cst_23 = arith.constant 0.000000e+00 : f32
    %32 = vector.broadcast %cst_23 : f32 to vector<8x1xf32>
    %33 = arith.cmpf olt, %29, %32 : vector<8x1xf32>
    %cst_24 = arith.constant 0.000000e+00 : f32
    %34 = arith.cmpf olt, %cst_21, %cst_24 : f32
    %35 = vector.broadcast %34 : i1 to vector<8x1xi1>
    %36 = vector.broadcast %35 : vector<8x1xi1> to vector<8x1xi1>
    %37 = arith.xori %33, %36 : vector<8x1xi1>
    %38 = arith.andi %37, %31 : vector<8x1xi1>
    %39 = vector.broadcast %cst_21 : f32 to vector<8x1xf32>
    %40 = arith.addf %29, %39 : vector<8x1xf32>
    %41 = arith.select %38, %40, %29 : vector<8x1xi1>, vector<8x1xf32>
    %c0_25 = arith.constant 0 : index
    %c0_26 = arith.constant 0 : index
    %42 = vector.load %arg9[%c0_25, %c0_26] : memref<8x1xf32, #tpu.memory_space<vmem>>, vector<8x1xf32>
    tpu.vector_store %arg9[%c0_25, %c0_26], %41 {strides = array<i32>} : memref<8x1xf32, #tpu.memory_space<vmem>>, vector<8x1xf32>,
    return
  }
  func.func @transform_0(%arg0: i32, %arg1: i32, %arg2: i32) -> (i32, i32) {
    %c0_i32 = arith.constant 0 : i32
    return %arg1, %arg2 : i32, i32
  }
  func.func @transform_1(%arg0: i32, %arg1: i32, %arg2: i32) -> (i32, i32, i32) {
    %c0_i32 = arith.constant 0 : i32
    %c0_i32_0 = arith.constant 0 : i32
    return %arg0, %arg1, %c0_i32 : i32, i32, i32
  }
  func.func @transform_2(%arg0: i32, %arg1: i32, %arg2: i32) -> (i32, i32, i32) {
    %c0_i32 = arith.constant 0 : i32
    %c0_i32_0 = arith.constant 0 : i32
    return %arg0, %arg1, %c0_i32 : i32, i32, i32
  }
  func.func @transform_3(%arg0: i32, %arg1: i32, %arg2: i32) -> (i32, i32) {
    %c0_i32 = arith.constant 0 : i32
    %c0_i32_0 = arith.constant 0 : i32
    %c0_i32_1 = arith.constant 0 : i32
    return %c0_i32, %c0_i32_0 : i32, i32
  }
  func.func @transform_4(%arg0: i32, %arg1: i32, %arg2: i32) -> (i32, i32, i32) {
    %c0_i32 = arith.constant 0 : i32
    return %arg0, %arg1, %arg2 : i32, i32, i32
  }
  func.func @transform_5(%arg0: i32, %arg1: i32, %arg2: i32) -> (i32, i32, i32) {
    %c0_i32 = arith.constant 0 : i32
    return %arg0, %arg1, %arg2 : i32, i32, i32
  }
}

</mosaic_0001>

<llo_original>
// kernel: tpu_custom_call.1
$region0: #{tpu_custom_call.1}
  #allocation0 [shape = 'u32[]', space=smem, size = 0x4, offset = 0x4, fixed_abs, tag = 'smem constant byte address 0x4 - core index']
  #allocation1 [shape = 'u32[72,128]{1,0:T(1,128)}', space=vmem, size = 0x9000, scoped, tag = 'internal scratch']
  #allocation2 [shape = 'f32[8,1]{1,0:T(8,128)}', space=vmem, size = 0x1000, scoped, tag = 'scratch operand']
  %s0 = inlined_call_operand.hbm [shape: f32[8,256], index: 0, kind: input, shape index: {}]
  %s1 = inlined_call_operand.vmem [shape: f32[4,8,1], index: 1, kind: input, shape index: {}]
  %s2 = inlined_call_operand.vmem [shape: f32[4,8,1], index: 2, kind: input, shape index: {}]
  %s3 = inlined_call_operand.hbm [shape: f32[256,256], index: 3, kind: input, shape index: {}]
  %s4 = inlined_call_operand.vmem [shape: f32[4,8,256], index: 4, kind: input, shape index: {}]
  %s5 = inlined_call_operand.hbm [shape: f32[4,8,256], index: 5, kind: output, shape index: {}]
  %s6 = sld [smem:[#allocation0]]
  $region65: #{tpu_custom_call.1} parent=0
    _
  %s8 = ssub.s32 1, %s6
  %s9 = scalar_select 0, %s8, %s6
  $region1: #{tpu_custom_call.1} parent=0
    #allocation3 [shape = 'u8[8192]{0}', space=vmem, size = 0x2000, scoped, tag = 'input window, operand 0, single buffered']
    #allocation4 [shape = 's32[2]{0}', space=sflag, size = 0x8, scoped, tag = 'scoped memory for tpu_custom_call.1']
    #allocation5 [shape = 's32[2]{0}', space=sflag, size = 0x8, scoped, tag = 'scoped memory for tpu_custom_call.1']
    #allocation6 [shape = 'u8[262144]{0}', space=vmem, size = 0x40000, scoped, tag = 'input window, operand 3, single buffered']
    #allocation7 [shape = 's32[1]{0}', space=sflag, size = 0x4, scoped, tag = 'scoped memory for tpu_custom_call.1']
    #allocation8 [shape = 'u8[32768]{0}', space=vmem, size = 0x8000, scoped, tag = 'output window, operand 0']
    %10 = vsyncpa [#allocation4], 0
    %11 = vsyncpa [#allocation7], 0
    %12 = vsyncpa [#allocation5], 0
    %s13 = scalar_lea.sflag [#allocation5], 1
    %14 = vsyncpa %s13, 0
    loop: start=0, step=1, limit=4
    $region2: #{tpu_custom_call.1} parent=1 // loop_pre_header
      _
    $region3: #{tpu_custom_call.1} parent=1 // loop_header
      %s16 = sphi 0, %s20
      %p17 = scmp.ge.s32.totalorder %s16, 4
      %s23 = sphi 0, %s42
      %s24 = sphi 0, %s38
      %s25 = sphi 0, %s34
      %s26 = sphi 0, %s23
      %s27 = sphi 0, %s24
      %s28 = sphi 0, %s25
      %s29 = sphi 0, %s26
      %s30 = sphi 0, %s27
      %s31 = sphi 0, %s28
      %s47 = sphi 0, %s49
      %s50 = sphi 0, %s47
      %s51 = sphi 0, %s50
      %s67 = sphi 0, %s51
      %s75 = sphi 0, %s77
      %s78 = sphi 0, %s75
      %s79 = sphi 0, %s78
      %s95 = sphi 0, %s79
      %s103 = sphi 0, %s105
      %s106 = sphi 0, %s103
      %s107 = sphi 0, %s106
      %s123 = sphi 0, %s107
      %s127 = sphi 0, %s127
      %s129 = sphi 0, %s127
      %s130 = sphi 0, %s129
      %s144 = sphi 0, %s130
      %s154 = sphi 0, %s156
      %s157 = sphi 0, %s154
      %s158 = sphi 0, %s157
      %s174 = sphi 0, %s158
      %s184 = sphi 0, %s186
      %s187 = sphi 0, %s184
      %s188 = sphi 0, %s187
      %s204 = sphi 0, %s188
    $region4: #{tpu_custom_call.1} parent=1 // loop_header_branch
      %19 = sbr.rel (%p17) target = $region8
    $region5: #{tpu_custom_call.1} parent=1 // loop_body
      %s21 = ssub.s32 %s16, 1
      %s22 = ssub.s32 %s16, 2
      %s32 = sadd.s32 1, %s25
      %p33 = scmp.ge.s32.totalorder %s32, 1
      %s34 = scalar_select %p33, 0, %s32
      %s35 = sadd.s32 1, %s24
      %s36 = scalar_select %p33, %s35, %s24
      %p37 = scmp.ge.s32.totalorder %s36, 1
      %s38 = scalar_select %p37, 0, %s36
      %s39 = sadd.s32 1, %s23
      %s40 = scalar_select %p37, %s39, %s23
      %p41 = scmp.ge.s32.totalorder %s40, 2
      %s42 = scalar_select %p41, 0, %s40
      %s43 = ssub.s32 %s24, %s38
      %s44 = ssub.s32 %s25, %s34
      %s45 = sor.u32 %s43, %s44
      %p46 = scmp.eq.s32.totalorder %s45, 0
      %s48 = sadd.s32 %s47, 1
      %s49 = scalar_select %p46, %s47, %s48
      %p52 = pneg %p46
      %p53 = scmp.eq.s32.totalorder %s16, 1
      %p54 = por %p52, %p53
      %p55 = scmp.ne.s32.totalorder %s47, %s50
      %p56 = scmp.eq.s32.totalorder %s16, 0
      %p57 = por %p55, %p56
      %p58 = scmp.ne.s32.totalorder %s47, %s50
      %p59 = scmp.eq.s32.totalorder %s21, 1
      %p60 = por %p58, %p59
      %p61 = scmp.ne.s32.totalorder %s50, %s51
      %p62 = scmp.eq.s32.totalorder %s21, 0
      %p63 = por %p61, %p62
      %p64 = scmp.ne.s32.totalorder %s50, %s51
      %p65 = scmp.eq.s32.totalorder %s22, 1
      %p66 = por %p64, %p65
      %p68 = scmp.ne.s32.totalorder %s51, %s67
      %p69 = scmp.eq.s32.totalorder %s22, 0
      %p70 = por %p68, %p69
      %s71 = ssub.s32 %s23, %s42
      %s72 = ssub.s32 %s24, %s38
      %s73 = sor.u32 %s71, %s72
      %p74 = scmp.eq.s32.totalorder %s73, 0
      %s76 = sadd.s32 %s75, 1
      %s77 = scalar_select %p74, %s75, %s76
      %p80 = pneg %p74
      %p81 = scmp.eq.s32.totalorder %s16, 1
      %p82 = por %p80, %p81
      %p83 = scmp.ne.s32.totalorder %s75, %s78
      %p84 = scmp.eq.s32.totalorder %s16, 0
      %p85 = por %p83, %p84
      %p86 = scmp.ne.s32.totalorder %s75, %s78
      %p87 = scmp.eq.s32.totalorder %s21, 1
      %p88 = por %p86, %p87
      %p89 = scmp.ne.s32.totalorder %s78, %s79
      %p90 = scmp.eq.s32.totalorder %s21, 0
      %p91 = por %p89, %p90
      %p92 = scmp.ne.s32.totalorder %s78, %s79
      %p93 = scmp.eq.s32.totalorder %s22, 1
      %p94 = por %p92, %p93
      %p96 = scmp.ne.s32.totalorder %s79, %s95
      %p97 = scmp.eq.s32.totalorder %s22, 0
      %p98 = por %p96, %p97
      %s99 = ssub.s32 %s23, %s42
      %s100 = ssub.s32 %s24, %s38
      %s101 = sor.u32 %s99, %s100
      %p102 = scmp.eq.s32.totalorder %s101, 0
      %s104 = sadd.s32 %s103, 1
      %s105 = scalar_select %p102, %s103, %s104
      %p108 = pneg %p102
      %p109 = scmp.eq.s32.totalorder %s16, 1
      %p110 = por %p108, %p109
      %p111 = scmp.ne.s32.totalorder %s103, %s106
      %p112 = scmp.eq.s32.totalorder %s16, 0
      %p113 = por %p111, %p112
      %p114 = scmp.ne.s32.totalorder %s103, %s106
      %p115 = scmp.eq.s32.totalorder %s21, 1
      %p116 = por %p114, %p115
      %p117 = scmp.ne.s32.totalorder %s106, %s107
      %p118 = scmp.eq.s32.totalorder %s21, 0
      %p119 = por %p117, %p118
      %p120 = scmp.ne.s32.totalorder %s106, %s107
      %p121 = scmp.eq.s32.totalorder %s22, 1
      %p122 = por %p120, %p121
      %p124 = scmp.ne.s32.totalorder %s107, %s123
      %p125 = scmp.eq.s32.totalorder %s22, 0
      %p126 = por %p124, %p125
      %s128 = sadd.s32 %s127, 1
      %p131 = scmp.eq.s32.totalorder %s16, 1
      %p132 = scmp.ne.s32.totalorder %s127, %s129
      %p133 = scmp.eq.s32.totalorder %s16, 0
      %p134 = por %p132, %p133
      %p135 = scmp.ne.s32.totalorder %s127, %s129
      %p136 = scmp.eq.s32.totalorder %s21, 1
      %p137 = por %p135, %p136
      %p138 = scmp.ne.s32.totalorder %s129, %s130
      %p139 = scmp.eq.s32.totalorder %s21, 0
      %p140 = por %p138, %p139
      %p141 = scmp.ne.s32.totalorder %s129, %s130
      %p142 = scmp.eq.s32.totalorder %s22, 1
      %p143 = por %p141, %p142
      %p145 = scmp.ne.s32.totalorder %s130, %s144
      %p146 = scmp.eq.s32.totalorder %s22, 0
      %p147 = por %p145, %p146
      %s148 = ssub.s32 %s23, %s42
      %s149 = ssub.s32 %s24, %s38
      %s150 = sor.u32 %s148, %s149
      %s151 = ssub.s32 %s25, %s34
      %s152 = sor.u32 %s150, %s151
      %p153 = scmp.eq.s32.totalorder %s152, 0
      %s155 = sadd.s32 %s154, 1
      %s156 = scalar_select %p153, %s154, %s155
      %p159 = pneg %p153
      %p160 = scmp.eq.s32.totalorder %s16, 1
      %p161 = por %p159, %p160
      %p162 = scmp.ne.s32.totalorder %s154, %s157
      %p163 = scmp.eq.s32.totalorder %s16, 0
      %p164 = por %p162, %p163
      %p165 = scmp.ne.s32.totalorder %s154, %s157
      %p166 = scmp.eq.s32.totalorder %s21, 1
      %p167 = por %p165, %p166
      %p168 = scmp.ne.s32.totalorder %s157, %s158
      %p169 = scmp.eq.s32.totalorder %s21, 0
      %p170 = por %p168, %p169
      %p171 = scmp.ne.s32.totalorder %s157, %s158
      %p172 = scmp.eq.s32.totalorder %s22, 1
      %p173 = por %p171, %p172
      %p175 = scmp.ne.s32.totalorder %s158, %s174
      %p176 = scmp.eq.s32.totalorder %s22, 0
      %p177 = por %p175, %p176
      %s178 = ssub.s32 %s23, %s42
      %s179 = ssub.s32 %s24, %s38
      %s180 = sor.u32 %s178, %s179
      %s181 = ssub.s32 %s25, %s34
      %s182 = sor.u32 %s180, %s181
      %p183 = scmp.eq.s32.totalorder %s182, 0
      %s185 = sadd.s32 %s184, 1
      %s186 = scalar_select %p183, %s184, %s185
      %p189 = pneg %p183
      %p190 = scmp.eq.s32.totalorder %s16, 1
      %p191 = por %p189, %p190
      %p192 = scmp.ne.s32.totalorder %s184, %s187
      %p193 = scmp.eq.s32.totalorder %s16, 0
      %p194 = por %p192, %p193
      %p195 = scmp.ne.s32.totalorder %s184, %s187
      %p196 = scmp.eq.s32.totalorder %s21, 1
      %p197 = por %p195, %p196
      %p198 = scmp.ne.s32.totalorder %s187, %s188
      %p199 = scmp.eq.s32.totalorder %s21, 0
      %p200 = por %p198, %p199
      %p201 = scmp.ne.s32.totalorder %s187, %s188
      %p202 = scmp.eq.s32.totalorder %s22, 1
      %p203 = por %p201, %p202
      %p205 = scmp.ne.s32.totalorder %s188, %s204
      %p206 = scmp.eq.s32.totalorder %s22, 0
      %p207 = por %p205, %p206
      %p208 = scmp.le.s32.totalorder 1, %s16
      %p209 = scmp.lt.s32.totalorder %s16, 3
      %p210 = pnand %p208, %p209
      %p211 = pneg %p210
      // Predicated region
      $region9: #{tpu_custom_call.1} parent=5 // pred_check
        _
      $region10: #{tpu_custom_call.1} parent=5 // pred_check_branch
        %213 = sbr.rel (%p210) target = $region12
      $region11: #{tpu_custom_call.1} parent=5 // pred_region
        %s214 = ssub.s32 %s16, 1
        // Predicated region
        $region13: #{tpu_custom_call.1} parent=11 // pred_check
          %p215 = pneg %p63
        $region14: #{tpu_custom_call.1} parent=11 // pred_check_branch
          %217 = sbr.rel (%p215) target = $region16
        $region15: #{tpu_custom_call.1} parent=11 // pred_region
          %s218 = smul.u32 2, %s28
          %220 = vsyncadd [#allocation4], 0
          %s221 = smul.addr %s27, 2
          %s222 = sadd.s32 %s218, %s221
          %s223 = smul.addr %s222, 8
          %s224 = scalar_lea.hbm %s0, %s223
          %s226 = sshll.u32 %s224, 4
          %s227 = int_to_ptr.hbm [resolvable:$true] %s226
          %s228 = sshll.u32 [#allocation3], 4
          %s229 = int_to_ptr.vmem [resolvable:$true] %s228
          %231 = dma.hbm_to_vmem [thread:$0]  %s227, 256, %s229, [#allocation4]
        $region16: #{tpu_custom_call.1} parent=11 // pred_fallthru
          _
        // Predicated region
        $region17: #{tpu_custom_call.1} parent=11 // pred_check
          %p232 = pneg %p140
        $region18: #{tpu_custom_call.1} parent=11 // pred_check_branch
          %234 = sbr.rel (%p232) target = $region20
        $region19: #{tpu_custom_call.1} parent=11 // pred_region
          %236 = vsyncadd [#allocation7], 0
          %s237 = sshll.u32 %s3, 4
          %s238 = int_to_ptr.hbm [resolvable:$true] %s237
          %s239 = sshll.u32 [#allocation6], 4
          %s240 = int_to_ptr.vmem [resolvable:$true] %s239
          %245 = dma.hbm_to_vmem [thread:$0]  %s238, 8192, %s240, [#allocation7], 256, 256, 16
        $region20: #{tpu_custom_call.1} parent=11 // pred_fallthru
          _
      $region12: #{tpu_custom_call.1} parent=5 // pred_fallthru
        _
      %p246 = scmp.lt.s32.totalorder %s16, 2
      // Predicated region
      $region21: #{tpu_custom_call.1} parent=5 // pred_check
        %p247 = pneg %p246
      $region22: #{tpu_custom_call.1} parent=5 // pred_check_branch
        %249 = sbr.rel (%p247) target = $region24
      $region23: #{tpu_custom_call.1} parent=5 // pred_region
        // Predicated region
        $region25: #{tpu_custom_call.1} parent=23 // pred_check
          %p250 = pneg %p85
        $region26: #{tpu_custom_call.1} parent=23 // pred_check_branch
          %252 = sbr.rel (%p250) target = $region28
        $region27: #{tpu_custom_call.1} parent=23 // pred_region
          %s253 = smul.u32 2, %s23
          %p254 = scmp.lt.s32.totalorder %s253, 3
          %s255 = scalar_select %p254, %s253, 3
          %p256 = scmp.lt.s32.totalorder %s24, 0
          %s257 = scalar_select %p256, %s24, 0
          %s258 = sadd.s32 %s257, %s255
          %s259 = smul.addr %s258, 8
          %s260 = scalar_lea.vmem %s1, %s259
          %s261 = smul.u32 2, %s23
        $region28: #{tpu_custom_call.1} parent=23 // pred_fallthru
          _
        // Predicated region
        $region29: #{tpu_custom_call.1} parent=23 // pred_check
          %p262 = pneg %p113
        $region30: #{tpu_custom_call.1} parent=23 // pred_check_branch
          %264 = sbr.rel (%p262) target = $region32
        $region31: #{tpu_custom_call.1} parent=23 // pred_region
          %s265 = smul.u32 2, %s23
          %p266 = scmp.lt.s32.totalorder %s265, 3
          %s267 = scalar_select %p266, %s265, 3
          %p268 = scmp.lt.s32.totalorder %s24, 0
          %s269 = scalar_select %p268, %s24, 0
          %s270 = sadd.s32 %s269, %s267
          %s271 = smul.addr %s270, 8
          %s272 = scalar_lea.vmem %s2, %s271
          %s273 = smul.u32 2, %s23
        $region32: #{tpu_custom_call.1} parent=23 // pred_fallthru
          _
        // Predicated region
        $region33: #{tpu_custom_call.1} parent=23 // pred_check
          %p274 = pneg %p164
        $region34: #{tpu_custom_call.1} parent=23 // pred_check_branch
          %276 = sbr.rel (%p274) target = $region36
        $region35: #{tpu_custom_call.1} parent=23 // pred_region
          %s277 = smul.u32 2, %s23
          %s278 = smul.u32 2, %s25
          %p279 = scmp.lt.s32.totalorder %s277, 3
          %s280 = scalar_select %p279, %s277, 3
          %p281 = scmp.lt.s32.totalorder %s24, 0
          %s282 = scalar_select %p281, %s24, 0
          %p283 = scmp.lt.s32.totalorder %s278, 1
          %s284 = scalar_select %p283, %s278, 1
          %s285 = smul.addr %s282, 2
          %s286 = sadd.s32 %s284, %s285
          %s287 = smul.addr %s280, 2
          %s288 = sadd.s32 %s286, %s287
          %s289 = smul.addr %s288, 8
          %s290 = scalar_lea.vmem %s4, %s289
          %s291 = smul.u32 2, %s23
          %s292 = smul.u32 2, %s25
        $region36: #{tpu_custom_call.1} parent=23 // pred_fallthru
          _
      $region24: #{tpu_custom_call.1} parent=5 // pred_fallthru
        _
      %p293 = scmp.le.s32.totalorder 1, %s16
      %p294 = scmp.lt.s32.totalorder %s16, 3
      %p295 = pnand %p293, %p294
      %p296 = pneg %p295
      // Predicated region
      $region37: #{tpu_custom_call.1} parent=5 // pred_check
        _
      $region38: #{tpu_custom_call.1} parent=5 // pred_check_branch
        %298 = sbr.rel (%p295) target = $region40
      $region39: #{tpu_custom_call.1} parent=5 // pred_region
        %s299 = ssub.s32 %s16, 1
        // Predicated region
        $region41: #{tpu_custom_call.1} parent=39 // pred_check
          %p300 = pneg %p63
        $region42: #{tpu_custom_call.1} parent=39 // pred_check_branch
          %302 = sbr.rel (%p300) target = $region44
        $region43: #{tpu_custom_call.1} parent=39 // pred_region
          %304 = dma.done [#allocation4], 256
        $region44: #{tpu_custom_call.1} parent=39 // pred_fallthru
          _
        // Predicated region
        $region45: #{tpu_custom_call.1} parent=39 // pred_check
          %p305 = pneg %p140
        $region46: #{tpu_custom_call.1} parent=39 // pred_check_branch
          %307 = sbr.rel (%p305) target = $region48
        $region47: #{tpu_custom_call.1} parent=39 // pred_region
          %309 = dma.done [#allocation7], 8192
        $region48: #{tpu_custom_call.1} parent=39 // pred_fallthru
          _
        %p310 = pneg %p63
        %p311 = pneg %p60
        %s312 = smul.u32 2, %s26
        %p313 = scmp.lt.s32.totalorder %s312, 3
        %s314 = scalar_select %p313, %s312, 3
        %p315 = scmp.lt.s32.totalorder %s27, 0
        %s316 = scalar_select %p315, %s27, 0
        %s317 = sadd.s32 %s316, %s314
        %s318 = smul.addr %s317, 8
        %s319 = scalar_lea.vmem %s1, %s318
        %p320 = pneg %p91
        %p321 = pneg %p88
        %s322 = smul.u32 2, %s26
        %p323 = scmp.lt.s32.totalorder %s322, 3
        %s324 = scalar_select %p323, %s322, 3
        %p325 = scmp.lt.s32.totalorder %s27, 0
        %s326 = scalar_select %p325, %s27, 0
        %s327 = sadd.s32 %s326, %s324
        %s328 = smul.addr %s327, 8
        %s329 = scalar_lea.vmem %s2, %s328
        %p330 = pneg %p119
        %p331 = pneg %p116
        %p332 = pneg %p140
        %p333 = pneg %p137
        %s334 = smul.u32 2, %s26
        %s335 = smul.u32 2, %s28
        %p336 = scmp.lt.s32.totalorder %s334, 3
        %s337 = scalar_select %p336, %s334, 3
        %p338 = scmp.lt.s32.totalorder %s27, 0
        %s339 = scalar_select %p338, %s27, 0
        %p340 = scmp.lt.s32.totalorder %s335, 1
        %s341 = scalar_select %p340, %s335, 1
        %s342 = smul.addr %s339, 2
        %s343 = sadd.s32 %s341, %s342
        %s344 = smul.addr %s337, 2
        %s345 = sadd.s32 %s343, %s344
        %s346 = smul.addr %s345, 8
        %s347 = scalar_lea.vmem %s4, %s346
        %p348 = pneg %p170
        %p349 = pneg %p167
        %p350 = pneg %p200
        %p351 = pneg %p197
        %s352 = sand.u32 %s187, 1
        %s353 = scalar_lea.sflag [#allocation5], %s352
        %s354 = sand.u32 %s187, 1
        %s355 = smul.addr %s354, 32
        %s356 = scalar_lea.vmem [#allocation8], %s355
        %s357 = smul.u32 2, %s28
        %s358 = smul.u32 2, %s26
        %p359 = scmp.lt.s32.totalorder %s358, 3
        %s360 = scalar_select %p359, %s358, 3
        %p361 = scmp.lt.s32.totalorder %s27, 0
        %s362 = scalar_select %p361, %s27, 0
        %s363 = sadd.s32 %s362, %s360
        %s364 = smul.addr %s363, 8
        %s365 = scalar_lea.vmem %s1, %s364
        %s366 = smul.u32 2, %s26
        %s367 = smul.u32 2, %s26
        %p368 = scmp.lt.s32.totalorder %s367, 3
        %s369 = scalar_select %p368, %s367, 3
        %p370 = scmp.lt.s32.totalorder %s27, 0
        %s371 = scalar_select %p370, %s27, 0
        %s372 = sadd.s32 %s371, %s369
        %s373 = smul.addr %s372, 8
        %s374 = scalar_lea.vmem %s2, %s373
        %s375 = smul.u32 2, %s26
        %s376 = smul.u32 2, %s26
        %s377 = smul.u32 2, %s28
        %p378 = scmp.lt.s32.totalorder %s376, 3
        %s379 = scalar_select %p378, %s376, 3
        %p380 = scmp.lt.s32.totalorder %s27, 0
        %s381 = scalar_select %p380, %s27, 0
        %p382 = scmp.lt.s32.totalorder %s377, 1
        %s383 = scalar_select %p382, %s377, 1
        %s384 = smul.addr %s381, 2
        %s385 = sadd.s32 %s383, %s384
        %s386 = smul.addr %s379, 2
        %s387 = sadd.s32 %s385, %s386
        %s388 = smul.addr %s387, 8
        %s389 = scalar_lea.vmem %s4, %s388
        %s390 = smul.u32 2, %s26
        %s391 = smul.u32 2, %s28
        %s392 = smul.u32 2, %s26
        %s393 = smul.u32 2, %s28
        %p394 = scmp.eq.s32.totalorder %s28, 0
        // Predicated region
        $region49: #{tpu_custom_call.1} parent=39 // pred_check
          %p395 = pneg %p394
        $region50: #{tpu_custom_call.1} parent=39 // pred_check_branch
          %397 = sbr.rel (%p395) target = $region52
        $region51: #{tpu_custom_call.1} parent=39 // pred_region
          %vm398 = vcmask 7168
          %399 = vst.msk [vmem:[#allocation2] sm:$0xff] %vm398, 0.0
        $region52: #{tpu_custom_call.1} parent=39 // pred_fallthru
          _
        %v400 = vld [vmem:[#allocation2] sm:$0xff]
        %v401 = vld [vmem:[%s365] sm:$0xff]
        %v402 = vld [vmem:[%s365 + $0x8] sm:$0xff]
        %v403 = vld [vmem:[%s374] sm:$0xff]
        %v404 = vld [vmem:[%s374 + $0x8] sm:$0xff]
        %v405 = vld [vmem:[#allocation6] sm:$0xff]
        %v406 = vld [vmem:[#allocation6 + $0x8] sm:$0xff]
        %v407 = vld [vmem:[#allocation6 + $0x10] sm:$0xff]
        %v408 = vld [vmem:[#allocation6 + $0x18] sm:$0xff]
        %v409 = vld [vmem:[#allocation6 + $0x20] sm:$0xff]
        %v410 = vld [vmem:[#allocation6 + $0x28] sm:$0xff]
        %v411 = vld [vmem:[#allocation6 + $0x30] sm:$0xff]
        %v412 = vld [vmem:[#allocation6 + $0x38] sm:$0xff]
        %v413 = vld [vmem:[#allocation6 + $0x40] sm:$0xff]
        %v414 = vld [vmem:[#allocation6 + $0x48] sm:$0xff]
        %v415 = vld [vmem:[#allocation6 + $0x50] sm:$0xff]
        %v416 = vld [vmem:[#allocation6 + $0x58] sm:$0xff]
        %v417 = vld [vmem:[#allocation6 + $0x60] sm:$0xff]
        %v418 = vld [vmem:[#allocation6 + $0x68] sm:$0xff]
        %v419 = vld [vmem:[#allocation6 + $0x70] sm:$0xff]
        %v420 = vld [vmem:[#allocation6 + $0x78] sm:$0xff]
        %v421 = vld [vmem:[#allocation6 + $0x80] sm:$0xff]
        %v422 = vld [vmem:[#allocation6 + $0x88] sm:$0xff]
        %v423 = vld [vmem:[#allocation6 + $0x90] sm:$0xff]
        %v424 = vld [vmem:[#allocation6 + $0x98] sm:$0xff]
        %v425 = vld [vmem:[#allocation6 + $0xa0] sm:$0xff]
        %v426 = vld [vmem:[#allocation6 + $0xa8] sm:$0xff]
        %v427 = vld [vmem:[#allocation6 + $0xb0] sm:$0xff]
        %v428 = vld [vmem:[#allocation6 + $0xb8] sm:$0xff]
        %v429 = vld [vmem:[#allocation6 + $0xc0] sm:$0xff]
        %v430 = vld [vmem:[#allocation6 + $0xc8] sm:$0xff]
        %v431 = vld [vmem:[#allocation6 + $0xd0] sm:$0xff]
        %v432 = vld [vmem:[#allocation6 + $0xd8] sm:$0xff]
        %v433 = vld [vmem:[#allocation6 + $0xe0] sm:$0xff]
        %v434 = vld [vmem:[#allocation6 + $0xe8] sm:$0xff]
        %v435 = vld [vmem:[#allocation6 + $0xf0] sm:$0xff]
        %v436 = vld [vmem:[#allocation6 + $0xf8] sm:$0xff]
        %v437 = vld [vmem:[#allocation6 + $0x100] sm:$0xff]
        %v438 = vld [vmem:[#allocation6 + $0x108] sm:$0xff]
        %v439 = vld [vmem:[#allocation6 + $0x110] sm:$0xff]
        %v440 = vld [vmem:[#allocation6 + $0x118] sm:$0xff]
        %v441 = vld [vmem:[#allocation6 + $0x120] sm:$0xff]
        %v442 = vld [vmem:[#allocation6 + $0x128] sm:$0xff]
        %v443 = vld [vmem:[#allocation6 + $0x130] sm:$0xff]
        %v444 = vld [vmem:[#allocation6 + $0x138] sm:$0xff]
        %v445 = vld [vmem:[#allocation6 + $0x140] sm:$0xff]
        %v446 = vld [vmem:[#allocation6 + $0x148] sm:$0xff]
        %v447 = vld [vmem:[#allocation6 + $0x150] sm:$0xff]
        %v448 = vld [vmem:[#allocation6 + $0x158] sm:$0xff]
        %v449 = vld [vmem:[#allocation6 + $0x160] sm:$0xff]
        %v450 = vld [vmem:[#allocation6 + $0x168] sm:$0xff]
        %v451 = vld [vmem:[#allocation6 + $0x170] sm:$0xff]
        %v452 = vld [vmem:[#allocation6 + $0x178] sm:$0xff]
        %v453 = vld [vmem:[#allocation6 + $0x180] sm:$0xff]
        %v454 = vld [vmem:[#allocation6 + $0x188] sm:$0xff]
        %v455 = vld [vmem:[#allocation6 + $0x190] sm:$0xff]
        %v456 = vld [vmem:[#allocation6 + $0x198] sm:$0xff]
        %v457 = vld [vmem:[#allocation6 + $0x1a0] sm:$0xff]
        %v458 = vld [vmem:[#allocation6 + $0x1a8] sm:$0xff]
        %v459 = vld [vmem:[#allocation6 + $0x1b0] sm:$0xff]
        %v460 = vld [vmem:[#allocation6 + $0x1b8] sm:$0xff]
        %v461 = vld [vmem:[#allocation6 + $0x1c0] sm:$0xff]
        %v462 = vld [vmem:[#allocation6 + $0x1c8] sm:$0xff]
        %v463 = vld [vmem:[#allocation6 + $0x1d0] sm:$0xff]
        %v464 = vld [vmem:[#allocation6 + $0x1d8] sm:$0xff]
        %v465 = vld [vmem:[#allocation6 + $0x1e0] sm:$0xff]
        %v466 = vld [vmem:[#allocation6 + $0x1e8] sm:$0xff]
        %v467 = vld [vmem:[#allocation6 + $0x1f0] sm:$0xff]
        %v468 = vld [vmem:[#allocation6 + $0x1f8] sm:$0xff]
        %v469 = vld [vmem:[#allocation3] sm:$0xff]
        %v470 = vld [vmem:[#allocation3 + $0x8] sm:$0xff]
        %v471 = vmul.f32 %v469, 6.25e-05
        %v472 = vmul.f32 %v470, 6.25e-05
        %v473 = vand.u32 %v435, 4294901760
        %474 = vmatpush.msra.mxu0 %v473
        %v475 = vand.u32 %v433, 4294901760
        %476 = vmatpush.msra.mxu0 %v475
        %v477 = vand.u32 %v431, 4294901760
        %478 = vmatpush.msra.mxu0 %v477
        %v479 = vand.u32 %v429, 4294901760
        %480 = vmatpush.msra.mxu0 %v479
        %v481 = vand.u32 %v427, 4294901760
        %482 = vmatpush.msra.mxu0 %v481
        %v483 = vand.u32 %v425, 4294901760
        %484 = vmatpush.msra.mxu0 %v483
        %v485 = vand.u32 %v423, 4294901760
        %486 = vmatpush.msra.mxu0 %v485
        %v487 = vand.u32 %v421, 4294901760
        %488 = vmatpush.msra.mxu0 %v487
        %v489 = vand.u32 %v419, 4294901760
        %490 = vmatpush.msra.mxu0 %v489
        %v491 = vand.u32 %v417, 4294901760
        %492 = vmatpush.msra.mxu0 %v491
        %v493 = vand.u32 %v415, 4294901760
        %494 = vmatpush.msra.mxu0 %v493
        %v495 = vand.u32 %v413, 4294901760
        %496 = vmatpush.msra.mxu0 %v495
        %v497 = vand.u32 %v411, 4294901760
        %498 = vmatpush.msra.mxu0 %v497
        %v499 = vand.u32 %v409, 4294901760
        %500 = vmatpush.msra.mxu0 %v499
        %v501 = vand.u32 %v407, 4294901760
        %502 = vmatpush.msra.mxu0 %v501
        %v503 = vand.u32 %v405, 4294901760
        %504 = vmatpush.msra.mxu0 %v503
        %v505 = vand.u32 %v471, 4294901760
        %v506 = vsub.f32 %v471, %v505
        %v507 = vand.u32 %v506, 4294901760
        %v508 = vsub.f32 %v506, %v507
        %v509 = vand.u32 %v508, 4294901760
        %510 = vmatmul.f32.gmra.mxu0 %v509
        %v511 = vpop.f32.mrf.mxu0
        %v512 = vadd.f32 0.0, %v511
        %513 = vdwg.mxu0
        %v514 = vand.u32 %v435, 4294901760
        %v515 = vsub.f32 %v435, %v514
        %v516 = vand.u32 %v515, 4294901760
        %v517 = vsub.f32 %v515, %v516
        %v518 = vand.u32 %v517, 4294901760
        %519 = vmatpush.msra.mxu0 %v518
        %v520 = vand.u32 %v433, 4294901760
        %v521 = vsub.f32 %v433, %v520
        %v522 = vand.u32 %v521, 4294901760
        %v523 = vsub.f32 %v521, %v522
        %v524 = vand.u32 %v523, 4294901760
        %525 = vmatpush.msra.mxu0 %v524
        %v526 = vand.u32 %v431, 4294901760
        %v527 = vsub.f32 %v431, %v526
        %v528 = vand.u32 %v527, 4294901760
        %v529 = vsub.f32 %v527, %v528
        %v530 = vand.u32 %v529, 4294901760
        %531 = vmatpush.msra.mxu0 %v530
        %v532 = vand.u32 %v429, 4294901760
        %v533 = vsub.f32 %v429, %v532
        %v534 = vand.u32 %v533, 4294901760
        %v535 = vsub.f32 %v533, %v534
        %v536 = vand.u32 %v535, 4294901760
        %537 = vmatpush.msra.mxu0 %v536
        %v538 = vand.u32 %v427, 4294901760
        %v539 = vsub.f32 %v427, %v538
        %v540 = vand.u32 %v539, 4294901760
        %v541 = vsub.f32 %v539, %v540
        %v542 = vand.u32 %v541, 4294901760
        %543 = vmatpush.msra.mxu0 %v542
        %v544 = vand.u32 %v425, 4294901760
        %v545 = vsub.f32 %v425, %v544
        %v546 = vand.u32 %v545, 4294901760
        %v547 = vsub.f32 %v545, %v546
        %v548 = vand.u32 %v547, 4294901760
        %549 = vmatpush.msra.mxu0 %v548
        %v550 = vand.u32 %v423, 4294901760
        %v551 = vsub.f32 %v423, %v550
        %v552 = vand.u32 %v551, 4294901760
        %v553 = vsub.f32 %v551, %v552
        %v554 = vand.u32 %v553, 4294901760
        %555 = vmatpush.msra.mxu0 %v554
        %v556 = vand.u32 %v421, 4294901760
        %v557 = vsub.f32 %v421, %v556
        %v558 = vand.u32 %v557, 4294901760
        %v559 = vsub.f32 %v557, %v558
        %v560 = vand.u32 %v559, 4294901760
        %561 = vmatpush.msra.mxu0 %v560
        %v562 = vand.u32 %v419, 4294901760
        %v563 = vsub.f32 %v419, %v562
        %v564 = vand.u32 %v563, 4294901760
        %v565 = vsub.f32 %v563, %v564
        %v566 = vand.u32 %v565, 4294901760
        %567 = vmatpush.msra.mxu0 %v566
        %v568 = vand.u32 %v417, 4294901760
        %v569 = vsub.f32 %v417, %v568
        %v570 = vand.u32 %v569, 4294901760
        %v571 = vsub.f32 %v569, %v570
        %v572 = vand.u32 %v571, 4294901760
        %573 = vmatpush.msra.mxu0 %v572
        %v574 = vand.u32 %v415, 4294901760
        %v575 = vsub.f32 %v415, %v574
        %v576 = vand.u32 %v575, 4294901760
        %v577 = vsub.f32 %v575, %v576
        %v578 = vand.u32 %v577, 4294901760
        %579 = vmatpush.msra.mxu0 %v578
        %v580 = vand.u32 %v413, 4294901760
        %v581 = vsub.f32 %v413, %v580
        %v582 = vand.u32 %v581, 4294901760
        %v583 = vsub.f32 %v581, %v582
        %v584 = vand.u32 %v583, 4294901760
        %585 = vmatpush.msra.mxu0 %v584
        %v586 = vand.u32 %v411, 4294901760
        %v587 = vsub.f32 %v411, %v586
        %v588 = vand.u32 %v587, 4294901760
        %v589 = vsub.f32 %v587, %v588
        %v590 = vand.u32 %v589, 4294901760
        %591 = vmatpush.msra.mxu0 %v590
        %v592 = vand.u32 %v409, 4294901760
        %v593 = vsub.f32 %v409, %v592
        %v594 = vand.u32 %v593, 4294901760
        %v595 = vsub.f32 %v593, %v594
        %v596 = vand.u32 %v595, 4294901760
        %597 = vmatpush.msra.mxu0 %v596
        %v598 = vand.u32 %v407, 4294901760
        %v599 = vsub.f32 %v407, %v598
        %v600 = vand.u32 %v599, 4294901760
        %v601 = vsub.f32 %v599, %v600
        %v602 = vand.u32 %v601, 4294901760
        %603 = vmatpush.msra.mxu0 %v602
        %v604 = vand.u32 %v405, 4294901760
        %v605 = vsub.f32 %v405, %v604
        %v606 = vand.u32 %v605, 4294901760
        %v607 = vsub.f32 %v605, %v606
        %v608 = vand.u32 %v607, 4294901760
        %609 = vmatpush.msra.mxu0 %v608
        %v610 = vand.u32 %v471, 4294901760
        %611 = vmatmul.f32.gmra.mxu0 %v610
        %v612 = vpop.f32.mrf.mxu0
        %v613 = vadd.f32 %v512, %v612
        %614 = vdwg.mxu0
        %v615 = vand.u32 %v435, 4294901760
        %v616 = vsub.f32 %v435, %v615
        %617 = vmatpush.msra.mxu0 %v616
        %v618 = vand.u32 %v433, 4294901760
        %v619 = vsub.f32 %v433, %v618
        %620 = vmatpush.msra.mxu0 %v619
        %v621 = vand.u32 %v431, 4294901760
        %v622 = vsub.f32 %v431, %v621
        %623 = vmatpush.msra.mxu0 %v622
        %v624 = vand.u32 %v429, 4294901760
        %v625 = vsub.f32 %v429, %v624
        %626 = vmatpush.msra.mxu0 %v625
        %v627 = vand.u32 %v427, 4294901760
        %v628 = vsub.f32 %v427, %v627
        %629 = vmatpush.msra.mxu0 %v628
        %v630 = vand.u32 %v425, 4294901760
        %v631 = vsub.f32 %v425, %v630
        %632 = vmatpush.msra.mxu0 %v631
        %v633 = vand.u32 %v423, 4294901760
        %v634 = vsub.f32 %v423, %v633
        %635 = vmatpush.msra.mxu0 %v634
        %v636 = vand.u32 %v421, 4294901760
        %v637 = vsub.f32 %v421, %v636
        %638 = vmatpush.msra.mxu0 %v637
        %v639 = vand.u32 %v419, 4294901760
        %v640 = vsub.f32 %v419, %v639
        %641 = vmatpush.msra.mxu0 %v640
        %v642 = vand.u32 %v417, 4294901760
        %v643 = vsub.f32 %v417, %v642
        %644 = vmatpush.msra.mxu0 %v643
        %v645 = vand.u32 %v415, 4294901760
        %v646 = vsub.f32 %v415, %v645
        %647 = vmatpush.msra.mxu0 %v646
        %v648 = vand.u32 %v413, 4294901760
        %v649 = vsub.f32 %v413, %v648
        %650 = vmatpush.msra.mxu0 %v649
        %v651 = vand.u32 %v411, 4294901760
        %v652 = vsub.f32 %v411, %v651
        %653 = vmatpush.msra.mxu0 %v652
        %v654 = vand.u32 %v409, 4294901760
        %v655 = vsub.f32 %v409, %v654
        %656 = vmatpush.msra.mxu0 %v655
        %v657 = vand.u32 %v407, 4294901760
        %v658 = vsub.f32 %v407, %v657
        %659 = vmatpush.msra.mxu0 %v658
        %v660 = vand.u32 %v405, 4294901760
        %v661 = vsub.f32 %v405, %v660
        %662 = vmatpush.msra.mxu0 %v661
        %v663 = vand.u32 %v471, 4294901760
        %v664 = vsub.f32 %v471, %v663
        %665 = vmatmul.f32.gmra.mxu0 %v664
        %v666 = vpop.f32.mrf.mxu0
        %v667 = vadd.f32 %v613, %v666
        %668 = vdwg.mxu0
        %v669 = vand.u32 %v435, 4294901760
        %670 = vmatpush.msra.mxu0 %v669
        %v671 = vand.u32 %v433, 4294901760
        %672 = vmatpush.msra.mxu0 %v671
        %v673 = vand.u32 %v431, 4294901760
        %674 = vmatpush.msra.mxu0 %v673
        %v675 = vand.u32 %v429, 4294901760
        %676 = vmatpush.msra.mxu0 %v675
        %v677 = vand.u32 %v427, 4294901760
        %678 = vmatpush.msra.mxu0 %v677
        %v679 = vand.u32 %v425, 4294901760
        %680 = vmatpush.msra.mxu0 %v679
        %v681 = vand.u32 %v423, 4294901760
        %682 = vmatpush.msra.mxu0 %v681
        %v683 = vand.u32 %v421, 4294901760
        %684 = vmatpush.msra.mxu0 %v683
        %v685 = vand.u32 %v419, 4294901760
        %686 = vmatpush.msra.mxu0 %v685
        %v687 = vand.u32 %v417, 4294901760
        %688 = vmatpush.msra.mxu0 %v687
        %v689 = vand.u32 %v415, 4294901760
        %690 = vmatpush.msra.mxu0 %v689
        %v691 = vand.u32 %v413, 4294901760
        %692 = vmatpush.msra.mxu0 %v691
        %v693 = vand.u32 %v411, 4294901760
        %694 = vmatpush.msra.mxu0 %v693
        %v695 = vand.u32 %v409, 4294901760
        %696 = vmatpush.msra.mxu0 %v695
        %v697 = vand.u32 %v407, 4294901760
        %698 = vmatpush.msra.mxu0 %v697
        %v699 = vand.u32 %v405, 4294901760
        %700 = vmatpush.msra.mxu0 %v699
        %v701 = vand.u32 %v471, 4294901760
        %v702 = vsub.f32 %v471, %v701
        %v703 = vand.u32 %v702, 4294901760
        %704 = vmatmul.f32.gmra.mxu0 %v703
        %v705 = vpop.f32.mrf.mxu0
        %v706 = vadd.f32 %v667, %v705
        %707 = vdwg.mxu0
        %v708 = vand.u32 %v435, 4294901760
        %v709 = vsub.f32 %v435, %v708
        %v710 = vand.u32 %v709, 4294901760
        %711 = vmatpush.msra.mxu0 %v710
        %v712 = vand.u32 %v433, 4294901760
        %v713 = vsub.f32 %v433, %v712
        %v714 = vand.u32 %v713, 4294901760
        %715 = vmatpush.msra.mxu0 %v714
        %v716 = vand.u32 %v431, 4294901760
        %v717 = vsub.f32 %v431, %v716
        %v718 = vand.u32 %v717, 4294901760
        %719 = vmatpush.msra.mxu0 %v718
        %v720 = vand.u32 %v429, 4294901760
        %v721 = vsub.f32 %v429, %v720
        %v722 = vand.u32 %v721, 4294901760
        %723 = vmatpush.msra.mxu0 %v722
        %v724 = vand.u32 %v427, 4294901760
        %v725 = vsub.f32 %v427, %v724
        %v726 = vand.u32 %v725, 4294901760
        %727 = vmatpush.msra.mxu0 %v726
        %v728 = vand.u32 %v425, 4294901760
        %v729 = vsub.f32 %v425, %v728
        %v730 = vand.u32 %v729, 4294901760
        %731 = vmatpush.msra.mxu0 %v730
        %v732 = vand.u32 %v423, 4294901760
        %v733 = vsub.f32 %v423, %v732
        %v734 = vand.u32 %v733, 4294901760
        %735 = vmatpush.msra.mxu0 %v734
        %v736 = vand.u32 %v421, 4294901760
        %v737 = vsub.f32 %v421, %v736
        %v738 = vand.u32 %v737, 4294901760
        %739 = vmatpush.msra.mxu0 %v738
        %v740 = vand.u32 %v419, 4294901760
        %v741 = vsub.f32 %v419, %v740
        %v742 = vand.u32 %v741, 4294901760
        %743 = vmatpush.msra.mxu0 %v742
        %v744 = vand.u32 %v417, 4294901760
        %v745 = vsub.f32 %v417, %v744
        %v746 = vand.u32 %v745, 4294901760
        %747 = vmatpush.msra.mxu0 %v746
        %v748 = vand.u32 %v415, 4294901760
        %v749 = vsub.f32 %v415, %v748
        %v750 = vand.u32 %v749, 4294901760
        %751 = vmatpush.msra.mxu0 %v750
        %v752 = vand.u32 %v413, 4294901760
        %v753 = vsub.f32 %v413, %v752
        %v754 = vand.u32 %v753, 4294901760
        %755 = vmatpush.msra.mxu0 %v754
        %v756 = vand.u32 %v411, 4294901760
        %v757 = vsub.f32 %v411, %v756
        %v758 = vand.u32 %v757, 4294901760
        %759 = vmatpush.msra.mxu0 %v758
        %v760 = vand.u32 %v409, 4294901760
        %v761 = vsub.f32 %v409, %v760
        %v762 = vand.u32 %v761, 4294901760
        %763 = vmatpush.msra.mxu0 %v762
        %v764 = vand.u32 %v407, 4294901760
        %v765 = vsub.f32 %v407, %v764
        %v766 = vand.u32 %v765, 4294901760
        %767 = vmatpush.msra.mxu0 %v766
        %v768 = vand.u32 %v405, 4294901760
        %v769 = vsub.f32 %v405, %v768
        %v770 = vand.u32 %v769, 4294901760
        %771 = vmatpush.msra.mxu0 %v770
        %v772 = vand.u32 %v471, 4294901760
        %773 = vmatmul.f32.gmra.mxu0 %v772
        %v774 = vpop.f32.mrf.mxu0
        %v775 = vadd.f32 %v706, %v774
        %776 = vdwg.mxu0
        %v777 = vand.u32 %v435, 4294901760
        %778 = vmatpush.msra.mxu0 %v777
        %v779 = vand.u32 %v433, 4294901760
        %780 = vmatpush.msra.mxu0 %v779
        %v781 = vand.u32 %v431, 4294901760
        %782 = vmatpush.msra.mxu0 %v781
        %v783 = vand.u32 %v429, 4294901760
        %784 = vmatpush.msra.mxu0 %v783
        %v785 = vand.u32 %v427, 4294901760
        %786 = vmatpush.msra.mxu0 %v785
        %v787 = vand.u32 %v425, 4294901760
        %788 = vmatpush.msra.mxu0 %v787
        %v789 = vand.u32 %v423, 4294901760
        %790 = vmatpush.msra.mxu0 %v789
        %v791 = vand.u32 %v421, 4294901760
        %792 = vmatpush.msra.mxu0 %v791
        %v793 = vand.u32 %v419, 4294901760
        %794 = vmatpush.msra.mxu0 %v793
        %v795 = vand.u32 %v417, 4294901760
        %796 = vmatpush.msra.mxu0 %v795
        %v797 = vand.u32 %v415, 4294901760
        %798 = vmatpush.msra.mxu0 %v797
        %v799 = vand.u32 %v413, 4294901760
        %800 = vmatpush.msra.mxu0 %v799
        %v801 = vand.u32 %v411, 4294901760
        %802 = vmatpush.msra.mxu0 %v801
        %v803 = vand.u32 %v409, 4294901760
        %804 = vmatpush.msra.mxu0 %v803
        %v805 = vand.u32 %v407, 4294901760
        %806 = vmatpush.msra.mxu0 %v805
        %v807 = vand.u32 %v405, 4294901760
        %808 = vmatpush.msra.mxu0 %v807
        %v809 = vand.u32 %v471, 4294901760
        %810 = vmatmul.f32.gmra.mxu0 %v809
        %v811 = vpop.f32.mrf.mxu0
        %v812 = vadd.f32 %v775, %v811
        %813 = vdwg.mxu0
        %v814 = vand.u32 %v467, 4294901760
        %815 = vmatpush.msra.mxu0 %v814
        %v816 = vand.u32 %v465, 4294901760
        %817 = vmatpush.msra.mxu0 %v816
        %v818 = vand.u32 %v463, 4294901760
        %819 = vmatpush.msra.mxu0 %v818
        %v820 = vand.u32 %v461, 4294901760
        %821 = vmatpush.msra.mxu0 %v820
        %v822 = vand.u32 %v459, 4294901760
        %823 = vmatpush.msra.mxu0 %v822
        %v824 = vand.u32 %v457, 4294901760
        %825 = vmatpush.msra.mxu0 %v824
        %v826 = vand.u32 %v455, 4294901760
        %827 = vmatpush.msra.mxu0 %v826
        %v828 = vand.u32 %v453, 4294901760
        %829 = vmatpush.msra.mxu0 %v828
        %v830 = vand.u32 %v451, 4294901760
        %831 = vmatpush.msra.mxu0 %v830
        %v832 = vand.u32 %v449, 4294901760
        %833 = vmatpush.msra.mxu0 %v832
        %v834 = vand.u32 %v447, 4294901760
        %835 = vmatpush.msra.mxu0 %v834
        %v836 = vand.u32 %v445, 4294901760
        %837 = vmatpush.msra.mxu0 %v836
        %v838 = vand.u32 %v443, 4294901760
        %839 = vmatpush.msra.mxu0 %v838
        %v840 = vand.u32 %v441, 4294901760
        %841 = vmatpush.msra.mxu0 %v840
        %v842 = vand.u32 %v439, 4294901760
        %843 = vmatpush.msra.mxu0 %v842
        %v844 = vand.u32 %v437, 4294901760
        %845 = vmatpush.msra.mxu0 %v844
        %v846 = vand.u32 %v472, 4294901760
        %v847 = vsub.f32 %v472, %v846
        %v848 = vand.u32 %v847, 4294901760
        %v849 = vsub.f32 %v847, %v848
        %v850 = vand.u32 %v849, 4294901760
        %851 = vmatmul.f32.gmra.mxu0 %v850
        %v852 = vpop.f32.mrf.mxu0
        %v853 = vadd.f32 %v812, %v852
        %854 = vdwg.mxu0
        %v855 = vand.u32 %v467, 4294901760
        %v856 = vsub.f32 %v467, %v855
        %v857 = vand.u32 %v856, 4294901760
        %v858 = vsub.f32 %v856, %v857
        %v859 = vand.u32 %v858, 4294901760
        %860 = vmatpush.msra.mxu0 %v859
        %v861 = vand.u32 %v465, 4294901760
        %v862 = vsub.f32 %v465, %v861
        %v863 = vand.u32 %v862, 4294901760
        %v864 = vsub.f32 %v862, %v863
        %v865 = vand.u32 %v864, 4294901760
        %866 = vmatpush.msra.mxu0 %v865
        %v867 = vand.u32 %v463, 4294901760
        %v868 = vsub.f32 %v463, %v867
        %v869 = vand.u32 %v868, 4294901760
        %v870 = vsub.f32 %v868, %v869
        %v871 = vand.u32 %v870, 4294901760
        %872 = vmatpush.msra.mxu0 %v871
        %v873 = vand.u32 %v461, 4294901760
        %v874 = vsub.f32 %v461, %v873
        %v875 = vand.u32 %v874, 4294901760
        %v876 = vsub.f32 %v874, %v875
        %v877 = vand.u32 %v876, 4294901760
        %878 = vmatpush.msra.mxu0 %v877
        %v879 = vand.u32 %v459, 4294901760
        %v880 = vsub.f32 %v459, %v879
        %v881 = vand.u32 %v880, 4294901760
        %v882 = vsub.f32 %v880, %v881
        %v883 = vand.u32 %v882, 4294901760
        %884 = vmatpush.msra.mxu0 %v883
        %v885 = vand.u32 %v457, 4294901760
        %v886 = vsub.f32 %v457, %v885
        %v887 = vand.u32 %v886, 4294901760
        %v888 = vsub.f32 %v886, %v887
        %v889 = vand.u32 %v888, 4294901760
        %890 = vmatpush.msra.mxu0 %v889
        %v891 = vand.u32 %v455, 4294901760
        %v892 = vsub.f32 %v455, %v891
        %v893 = vand.u32 %v892, 4294901760
        %v894 = vsub.f32 %v892, %v893
        %v895 = vand.u32 %v894, 4294901760
        %896 = vmatpush.msra.mxu0 %v895
        %v897 = vand.u32 %v453, 4294901760
        %v898 = vsub.f32 %v453, %v897
        %v899 = vand.u32 %v898, 4294901760
        %v900 = vsub.f32 %v898, %v899
        %v901 = vand.u32 %v900, 4294901760
        %902 = vmatpush.msra.mxu0 %v901
        %v903 = vand.u32 %v451, 4294901760
        %v904 = vsub.f32 %v451, %v903
        %v905 = vand.u32 %v904, 4294901760
        %v906 = vsub.f32 %v904, %v905
        %v907 = vand.u32 %v906, 4294901760
        %908 = vmatpush.msra.mxu0 %v907
        %v909 = vand.u32 %v449, 4294901760
        %v910 = vsub.f32 %v449, %v909
        %v911 = vand.u32 %v910, 4294901760
        %v912 = vsub.f32 %v910, %v911
        %v913 = vand.u32 %v912, 4294901760
        %914 = vmatpush.msra.mxu0 %v913
        %v915 = vand.u32 %v447, 4294901760
        %v916 = vsub.f32 %v447, %v915
        %v917 = vand.u32 %v916, 4294901760
        %v918 = vsub.f32 %v916, %v917
        %v919 = vand.u32 %v918, 4294901760
        %920 = vmatpush.msra.mxu0 %v919
        %v921 = vand.u32 %v445, 4294901760
        %v922 = vsub.f32 %v445, %v921
        %v923 = vand.u32 %v922, 4294901760
        %v924 = vsub.f32 %v922, %v923
        %v925 = vand.u32 %v924, 4294901760
        %926 = vmatpush.msra.mxu0 %v925
        %v927 = vand.u32 %v443, 4294901760
        %v928 = vsub.f32 %v443, %v927
        %v929 = vand.u32 %v928, 4294901760
        %v930 = vsub.f32 %v928, %v929
        %v931 = vand.u32 %v930, 4294901760
        %932 = vmatpush.msra.mxu0 %v931
        %v933 = vand.u32 %v441, 4294901760
        %v934 = vsub.f32 %v441, %v933
        %v935 = vand.u32 %v934, 4294901760
        %v936 = vsub.f32 %v934, %v935
        %v937 = vand.u32 %v936, 4294901760
        %938 = vmatpush.msra.mxu0 %v937
        %v939 = vand.u32 %v439, 4294901760
        %v940 = vsub.f32 %v439, %v939
        %v941 = vand.u32 %v940, 4294901760
        %v942 = vsub.f32 %v940, %v941
        %v943 = vand.u32 %v942, 4294901760
        %944 = vmatpush.msra.mxu0 %v943
        %v945 = vand.u32 %v437, 4294901760
        %v946 = vsub.f32 %v437, %v945
        %v947 = vand.u32 %v946, 4294901760
        %v948 = vsub.f32 %v946, %v947
        %v949 = vand.u32 %v948, 4294901760
        %950 = vmatpush.msra.mxu0 %v949
        %v951 = vand.u32 %v472, 4294901760
        %952 = vmatmul.f32.gmra.mxu0 %v951
        %v953 = vpop.f32.mrf.mxu0
        %v954 = vadd.f32 %v853, %v953
        %955 = vdwg.mxu0
        %v956 = vand.u32 %v467, 4294901760
        %v957 = vsub.f32 %v467, %v956
        %958 = vmatpush.msra.mxu0 %v957
        %v959 = vand.u32 %v465, 4294901760
        %v960 = vsub.f32 %v465, %v959
        %961 = vmatpush.msra.mxu0 %v960
        %v962 = vand.u32 %v463, 4294901760
        %v963 = vsub.f32 %v463, %v962
        %964 = vmatpush.msra.mxu0 %v963
        %v965 = vand.u32 %v461, 4294901760
        %v966 = vsub.f32 %v461, %v965
        %967 = vmatpush.msra.mxu0 %v966
        %v968 = vand.u32 %v459, 4294901760
        %v969 = vsub.f32 %v459, %v968
        %970 = vmatpush.msra.mxu0 %v969
        %v971 = vand.u32 %v457, 4294901760
        %v972 = vsub.f32 %v457, %v971
        %973 = vmatpush.msra.mxu0 %v972
        %v974 = vand.u32 %v455, 4294901760
        %v975 = vsub.f32 %v455, %v974
        %976 = vmatpush.msra.mxu0 %v975
        %v977 = vand.u32 %v453, 4294901760
        %v978 = vsub.f32 %v453, %v977
        %979 = vmatpush.msra.mxu0 %v978
        %v980 = vand.u32 %v451, 4294901760
        %v981 = vsub.f32 %v451, %v980
        %982 = vmatpush.msra.mxu0 %v981
        %v983 = vand.u32 %v449, 4294901760
        %v984 = vsub.f32 %v449, %v983
        %985 = vmatpush.msra.mxu0 %v984
        %v986 = vand.u32 %v447, 4294901760
        %v987 = vsub.f32 %v447, %v986
        %988 = vmatpush.msra.mxu0 %v987
        %v989 = vand.u32 %v445, 4294901760
        %v990 = vsub.f32 %v445, %v989
        %991 = vmatpush.msra.mxu0 %v990
        %v992 = vand.u32 %v443, 4294901760
        %v993 = vsub.f32 %v443, %v992
        %994 = vmatpush.msra.mxu0 %v993
        %v995 = vand.u32 %v441, 4294901760
        %v996 = vsub.f32 %v441, %v995
        %997 = vmatpush.msra.mxu0 %v996
        %v998 = vand.u32 %v439, 4294901760
        %v999 = vsub.f32 %v439, %v998
        %1000 = vmatpush.msra.mxu0 %v999
        %v1001 = vand.u32 %v437, 4294901760
        %v1002 = vsub.f32 %v437, %v1001
        %1003 = vmatpush.msra.mxu0 %v1002
        %v1004 = vand.u32 %v472, 4294901760
        %v1005 = vsub.f32 %v472, %v1004
        %1006 = vmatmul.f32.gmra.mxu0 %v1005
        %v1007 = vpop.f32.mrf.mxu0
        %v1008 = vadd.f32 %v954, %v1007
        %1009 = vdwg.mxu0
        %v1010 = vand.u32 %v467, 4294901760
        %1011 = vmatpush.msra.mxu0 %v1010
        %v1012 = vand.u32 %v465, 4294901760
        %1013 = vmatpush.msra.mxu0 %v1012
        %v1014 = vand.u32 %v463, 4294901760
        %1015 = vmatpush.msra.mxu0 %v1014
        %v1016 = vand.u32 %v461, 4294901760
        %1017 = vmatpush.msra.mxu0 %v1016
        %v1018 = vand.u32 %v459, 4294901760
        %1019 = vmatpush.msra.mxu0 %v1018
        %v1020 = vand.u32 %v457, 4294901760
        %1021 = vmatpush.msra.mxu0 %v1020
        %v1022 = vand.u32 %v455, 4294901760
        %1023 = vmatpush.msra.mxu0 %v1022
        %v1024 = vand.u32 %v453, 4294901760
        %1025 = vmatpush.msra.mxu0 %v1024
        %v1026 = vand.u32 %v451, 4294901760
        %1027 = vmatpush.msra.mxu0 %v1026
        %v1028 = vand.u32 %v449, 4294901760
        %1029 = vmatpush.msra.mxu0 %v1028
        %v1030 = vand.u32 %v447, 4294901760
        %1031 = vmatpush.msra.mxu0 %v1030
        %v1032 = vand.u32 %v445, 4294901760
        %1033 = vmatpush.msra.mxu0 %v1032
        %v1034 = vand.u32 %v443, 4294901760
        %1035 = vmatpush.msra.mxu0 %v1034
        %v1036 = vand.u32 %v441, 4294901760
        %1037 = vmatpush.msra.mxu0 %v1036
        %v1038 = vand.u32 %v439, 4294901760
        %1039 = vmatpush.msra.mxu0 %v1038
        %v1040 = vand.u32 %v437, 4294901760
        %1041 = vmatpush.msra.mxu0 %v1040
        %v1042 = vand.u32 %v472, 4294901760
        %v1043 = vsub.f32 %v472, %v1042
        %v1044 = vand.u32 %v1043, 4294901760
        %1045 = vmatmul.f32.gmra.mxu0 %v1044
        %v1046 = vpop.f32.mrf.mxu0
        %v1047 = vadd.f32 %v1008, %v1046
        %1048 = vdwg.mxu0
        %v1049 = vand.u32 %v467, 4294901760
        %v1050 = vsub.f32 %v467, %v1049
        %v1051 = vand.u32 %v1050, 4294901760
        %1052 = vmatpush.msra.mxu0 %v1051
        %v1053 = vand.u32 %v465, 4294901760
        %v1054 = vsub.f32 %v465, %v1053
        %v1055 = vand.u32 %v1054, 4294901760
        %1056 = vmatpush.msra.mxu0 %v1055
        %v1057 = vand.u32 %v463, 4294901760
        %v1058 = vsub.f32 %v463, %v1057
        %v1059 = vand.u32 %v1058, 4294901760
        %1060 = vmatpush.msra.mxu0 %v1059
        %v1061 = vand.u32 %v461, 4294901760
        %v1062 = vsub.f32 %v461, %v1061
        %v1063 = vand.u32 %v1062, 4294901760
        %1064 = vmatpush.msra.mxu0 %v1063
        %v1065 = vand.u32 %v459, 4294901760
        %v1066 = vsub.f32 %v459, %v1065
        %v1067 = vand.u32 %v1066, 4294901760
        %1068 = vmatpush.msra.mxu0 %v1067
        %v1069 = vand.u32 %v457, 4294901760
        %v1070 = vsub.f32 %v457, %v1069
        %v1071 = vand.u32 %v1070, 4294901760
        %1072 = vmatpush.msra.mxu0 %v1071
        %v1073 = vand.u32 %v455, 4294901760
        %v1074 = vsub.f32 %v455, %v1073
        %v1075 = vand.u32 %v1074, 4294901760
        %1076 = vmatpush.msra.mxu0 %v1075
        %v1077 = vand.u32 %v453, 4294901760
        %v1078 = vsub.f32 %v453, %v1077
        %v1079 = vand.u32 %v1078, 4294901760
        %1080 = vmatpush.msra.mxu0 %v1079
        %v1081 = vand.u32 %v451, 4294901760
        %v1082 = vsub.f32 %v451, %v1081
        %v1083 = vand.u32 %v1082, 4294901760
        %1084 = vmatpush.msra.mxu0 %v1083
        %v1085 = vand.u32 %v449, 4294901760
        %v1086 = vsub.f32 %v449, %v1085
        %v1087 = vand.u32 %v1086, 4294901760
        %1088 = vmatpush.msra.mxu0 %v1087
        %v1089 = vand.u32 %v447, 4294901760
        %v1090 = vsub.f32 %v447, %v1089
        %v1091 = vand.u32 %v1090, 4294901760
        %1092 = vmatpush.msra.mxu0 %v1091
        %v1093 = vand.u32 %v445, 4294901760
        %v1094 = vsub.f32 %v445, %v1093
        %v1095 = vand.u32 %v1094, 4294901760
        %1096 = vmatpush.msra.mxu0 %v1095
        %v1097 = vand.u32 %v443, 4294901760
        %v1098 = vsub.f32 %v443, %v1097
        %v1099 = vand.u32 %v1098, 4294901760
        %1100 = vmatpush.msra.mxu0 %v1099
        %v1101 = vand.u32 %v441, 4294901760
        %v1102 = vsub.f32 %v441, %v1101
        %v1103 = vand.u32 %v1102, 4294901760
        %1104 = vmatpush.msra.mxu0 %v1103
        %v1105 = vand.u32 %v439, 4294901760
        %v1106 = vsub.f32 %v439, %v1105
        %v1107 = vand.u32 %v1106, 4294901760
        %1108 = vmatpush.msra.mxu0 %v1107
        %v1109 = vand.u32 %v437, 4294901760
        %v1110 = vsub.f32 %v437, %v1109
        %v1111 = vand.u32 %v1110, 4294901760
        %1112 = vmatpush.msra.mxu0 %v1111
        %v1113 = vand.u32 %v472, 4294901760
        %1114 = vmatmul.f32.gmra.mxu0 %v1113
        %v1115 = vpop.f32.mrf.mxu0
        %v1116 = vadd.f32 %v1047, %v1115
        %1117 = vdwg.mxu0
        %v1118 = vand.u32 %v467, 4294901760
        %1119 = vmatpush.msra.mxu0 %v1118
        %v1120 = vand.u32 %v465, 4294901760
        %1121 = vmatpush.msra.mxu0 %v1120
        %v1122 = vand.u32 %v463, 4294901760
        %1123 = vmatpush.msra.mxu0 %v1122
        %v1124 = vand.u32 %v461, 4294901760
        %1125 = vmatpush.msra.mxu0 %v1124
        %v1126 = vand.u32 %v459, 4294901760
        %1127 = vmatpush.msra.mxu0 %v1126
        %v1128 = vand.u32 %v457, 4294901760
        %1129 = vmatpush.msra.mxu0 %v1128
        %v1130 = vand.u32 %v455, 4294901760
        %1131 = vmatpush.msra.mxu0 %v1130
        %v1132 = vand.u32 %v453, 4294901760
        %1133 = vmatpush.msra.mxu0 %v1132
        %v1134 = vand.u32 %v451, 4294901760
        %1135 = vmatpush.msra.mxu0 %v1134
        %v1136 = vand.u32 %v449, 4294901760
        %1137 = vmatpush.msra.mxu0 %v1136
        %v1138 = vand.u32 %v447, 4294901760
        %1139 = vmatpush.msra.mxu0 %v1138
        %v1140 = vand.u32 %v445, 4294901760
        %1141 = vmatpush.msra.mxu0 %v1140
        %v1142 = vand.u32 %v443, 4294901760
        %1143 = vmatpush.msra.mxu0 %v1142
        %v1144 = vand.u32 %v441, 4294901760
        %1145 = vmatpush.msra.mxu0 %v1144
        %v1146 = vand.u32 %v439, 4294901760
        %1147 = vmatpush.msra.mxu0 %v1146
        %v1148 = vand.u32 %v437, 4294901760
        %1149 = vmatpush.msra.mxu0 %v1148
        %v1150 = vand.u32 %v472, 4294901760
        %1151 = vmatmul.f32.gmra.mxu0 %v1150
        %v1152 = vpop.f32.mrf.mxu0
        %v1153 = vadd.f32 %v1116, %v1152
        %1154 = vdwg.mxu0
        %v1155 = vand.u32 %v436, 4294901760
        %1156 = vmatpush.msra.mxu0 %v1155
        %v1157 = vand.u32 %v434, 4294901760
        %1158 = vmatpush.msra.mxu0 %v1157
        %v1159 = vand.u32 %v432, 4294901760
        %1160 = vmatpush.msra.mxu0 %v1159
        %v1161 = vand.u32 %v430, 4294901760
        %1162 = vmatpush.msra.mxu0 %v1161
        %v1163 = vand.u32 %v428, 4294901760
        %1164 = vmatpush.msra.mxu0 %v1163
        %v1165 = vand.u32 %v426, 4294901760
        %1166 = vmatpush.msra.mxu0 %v1165
        %v1167 = vand.u32 %v424, 4294901760
        %1168 = vmatpush.msra.mxu0 %v1167
        %v1169 = vand.u32 %v422, 4294901760
        %1170 = vmatpush.msra.mxu0 %v1169
        %v1171 = vand.u32 %v420, 4294901760
        %1172 = vmatpush.msra.mxu0 %v1171
        %v1173 = vand.u32 %v418, 4294901760
        %1174 = vmatpush.msra.mxu0 %v1173
        %v1175 = vand.u32 %v416, 4294901760
        %1176 = vmatpush.msra.mxu0 %v1175
        %v1177 = vand.u32 %v414, 4294901760
        %1178 = vmatpush.msra.mxu0 %v1177
        %v1179 = vand.u32 %v412, 4294901760
        %1180 = vmatpush.msra.mxu0 %v1179
        %v1181 = vand.u32 %v410, 4294901760
        %1182 = vmatpush.msra.mxu0 %v1181
        %v1183 = vand.u32 %v408, 4294901760
        %1184 = vmatpush.msra.mxu0 %v1183
        %v1185 = vand.u32 %v406, 4294901760
        %1186 = vmatpush.msra.mxu0 %v1185
        %v1187 = vand.u32 %v471, 4294901760
        %v1188 = vsub.f32 %v471, %v1187
        %v1189 = vand.u32 %v1188, 4294901760
        %v1190 = vsub.f32 %v1188, %v1189
        %v1191 = vand.u32 %v1190, 4294901760
        %1192 = vmatmul.f32.gmra.mxu0 %v1191
        %v1193 = vpop.f32.mrf.mxu0
        %v1194 = vadd.f32 0.0, %v1193
        %1195 = vdwg.mxu0
        %v1196 = vand.u32 %v436, 4294901760
        %v1197 = vsub.f32 %v436, %v1196
        %v1198 = vand.u32 %v1197, 4294901760
        %v1199 = vsub.f32 %v1197, %v1198
        %v1200 = vand.u32 %v1199, 4294901760
        %1201 = vmatpush.msra.mxu0 %v1200
        %v1202 = vand.u32 %v434, 4294901760
        %v1203 = vsub.f32 %v434, %v1202
        %v1204 = vand.u32 %v1203, 4294901760
        %v1205 = vsub.f32 %v1203, %v1204
        %v1206 = vand.u32 %v1205, 4294901760
        %1207 = vmatpush.msra.mxu0 %v1206
        %v1208 = vand.u32 %v432, 4294901760
        %v1209 = vsub.f32 %v432, %v1208
        %v1210 = vand.u32 %v1209, 4294901760
        %v1211 = vsub.f32 %v1209, %v1210
        %v1212 = vand.u32 %v1211, 4294901760
        %1213 = vmatpush.msra.mxu0 %v1212
        %v1214 = vand.u32 %v430, 4294901760
        %v1215 = vsub.f32 %v430, %v1214
        %v1216 = vand.u32 %v1215, 4294901760
        %v1217 = vsub.f32 %v1215, %v1216
        %v1218 = vand.u32 %v1217, 4294901760
        %1219 = vmatpush.msra.mxu0 %v1218
        %v1220 = vand.u32 %v428, 4294901760
        %v1221 = vsub.f32 %v428, %v1220
        %v1222 = vand.u32 %v1221, 4294901760
        %v1223 = vsub.f32 %v1221, %v1222
        %v1224 = vand.u32 %v1223, 4294901760
        %1225 = vmatpush.msra.mxu0 %v1224
        %v1226 = vand.u32 %v426, 4294901760
        %v1227 = vsub.f32 %v426, %v1226
        %v1228 = vand.u32 %v1227, 4294901760
        %v1229 = vsub.f32 %v1227, %v1228
        %v1230 = vand.u32 %v1229, 4294901760
        %1231 = vmatpush.msra.mxu0 %v1230
        %v1232 = vand.u32 %v424, 4294901760
        %v1233 = vsub.f32 %v424, %v1232
        %v1234 = vand.u32 %v1233, 4294901760
        %v1235 = vsub.f32 %v1233, %v1234
        %v1236 = vand.u32 %v1235, 4294901760
        %1237 = vmatpush.msra.mxu0 %v1236
        %v1238 = vand.u32 %v422, 4294901760
        %v1239 = vsub.f32 %v422, %v1238
        %v1240 = vand.u32 %v1239, 4294901760
        %v1241 = vsub.f32 %v1239, %v1240
        %v1242 = vand.u32 %v1241, 4294901760
        %1243 = vmatpush.msra.mxu0 %v1242
        %v1244 = vand.u32 %v420, 4294901760
        %v1245 = vsub.f32 %v420, %v1244
        %v1246 = vand.u32 %v1245, 4294901760
        %v1247 = vsub.f32 %v1245, %v1246
        %v1248 = vand.u32 %v1247, 4294901760
        %1249 = vmatpush.msra.mxu0 %v1248
        %v1250 = vand.u32 %v418, 4294901760
        %v1251 = vsub.f32 %v418, %v1250
        %v1252 = vand.u32 %v1251, 4294901760
        %v1253 = vsub.f32 %v1251, %v1252
        %v1254 = vand.u32 %v1253, 4294901760
        %1255 = vmatpush.msra.mxu0 %v1254
        %v1256 = vand.u32 %v416, 4294901760
        %v1257 = vsub.f32 %v416, %v1256
        %v1258 = vand.u32 %v1257, 4294901760
        %v1259 = vsub.f32 %v1257, %v1258
        %v1260 = vand.u32 %v1259, 4294901760
        %1261 = vmatpush.msra.mxu0 %v1260
        %v1262 = vand.u32 %v414, 4294901760
        %v1263 = vsub.f32 %v414, %v1262
        %v1264 = vand.u32 %v1263, 4294901760
        %v1265 = vsub.f32 %v1263, %v1264
        %v1266 = vand.u32 %v1265, 4294901760
        %1267 = vmatpush.msra.mxu0 %v1266
        %v1268 = vand.u32 %v412, 4294901760
        %v1269 = vsub.f32 %v412, %v1268
        %v1270 = vand.u32 %v1269, 4294901760
        %v1271 = vsub.f32 %v1269, %v1270
        %v1272 = vand.u32 %v1271, 4294901760
        %1273 = vmatpush.msra.mxu0 %v1272
        %v1274 = vand.u32 %v410, 4294901760
        %v1275 = vsub.f32 %v410, %v1274
        %v1276 = vand.u32 %v1275, 4294901760
        %v1277 = vsub.f32 %v1275, %v1276
        %v1278 = vand.u32 %v1277, 4294901760
        %1279 = vmatpush.msra.mxu0 %v1278
        %v1280 = vand.u32 %v408, 4294901760
        %v1281 = vsub.f32 %v408, %v1280
        %v1282 = vand.u32 %v1281, 4294901760
        %v1283 = vsub.f32 %v1281, %v1282
        %v1284 = vand.u32 %v1283, 4294901760
        %1285 = vmatpush.msra.mxu0 %v1284
        %v1286 = vand.u32 %v406, 4294901760
        %v1287 = vsub.f32 %v406, %v1286
        %v1288 = vand.u32 %v1287, 4294901760
        %v1289 = vsub.f32 %v1287, %v1288
        %v1290 = vand.u32 %v1289, 4294901760
        %1291 = vmatpush.msra.mxu0 %v1290
        %v1292 = vand.u32 %v471, 4294901760
        %1293 = vmatmul.f32.gmra.mxu0 %v1292
        %v1294 = vpop.f32.mrf.mxu0
        %v1295 = vadd.f32 %v1194, %v1294
        %1296 = vdwg.mxu0
        %v1297 = vand.u32 %v436, 4294901760
        %v1298 = vsub.f32 %v436, %v1297
        %1299 = vmatpush.msra.mxu0 %v1298
        %v1300 = vand.u32 %v434, 4294901760
        %v1301 = vsub.f32 %v434, %v1300
        %1302 = vmatpush.msra.mxu0 %v1301
        %v1303 = vand.u32 %v432, 4294901760
        %v1304 = vsub.f32 %v432, %v1303
        %1305 = vmatpush.msra.mxu0 %v1304
        %v1306 = vand.u32 %v430, 4294901760
        %v1307 = vsub.f32 %v430, %v1306
        %1308 = vmatpush.msra.mxu0 %v1307
        %v1309 = vand.u32 %v428, 4294901760
        %v1310 = vsub.f32 %v428, %v1309
        %1311 = vmatpush.msra.mxu0 %v1310
        %v1312 = vand.u32 %v426, 4294901760
        %v1313 = vsub.f32 %v426, %v1312
        %1314 = vmatpush.msra.mxu0 %v1313
        %v1315 = vand.u32 %v424, 4294901760
        %v1316 = vsub.f32 %v424, %v1315
        %1317 = vmatpush.msra.mxu0 %v1316
        %v1318 = vand.u32 %v422, 4294901760
        %v1319 = vsub.f32 %v422, %v1318
        %1320 = vmatpush.msra.mxu0 %v1319
        %v1321 = vand.u32 %v420, 4294901760
        %v1322 = vsub.f32 %v420, %v1321
        %1323 = vmatpush.msra.mxu0 %v1322
        %v1324 = vand.u32 %v418, 4294901760
        %v1325 = vsub.f32 %v418, %v1324
        %1326 = vmatpush.msra.mxu0 %v1325
        %v1327 = vand.u32 %v416, 4294901760
        %v1328 = vsub.f32 %v416, %v1327
        %1329 = vmatpush.msra.mxu0 %v1328
        %v1330 = vand.u32 %v414, 4294901760
        %v1331 = vsub.f32 %v414, %v1330
        %1332 = vmatpush.msra.mxu0 %v1331
        %v1333 = vand.u32 %v412, 4294901760
        %v1334 = vsub.f32 %v412, %v1333
        %1335 = vmatpush.msra.mxu0 %v1334
        %v1336 = vand.u32 %v410, 4294901760
        %v1337 = vsub.f32 %v410, %v1336
        %1338 = vmatpush.msra.mxu0 %v1337
        %v1339 = vand.u32 %v408, 4294901760
        %v1340 = vsub.f32 %v408, %v1339
        %1341 = vmatpush.msra.mxu0 %v1340
        %v1342 = vand.u32 %v406, 4294901760
        %v1343 = vsub.f32 %v406, %v1342
        %1344 = vmatpush.msra.mxu0 %v1343
        %v1345 = vand.u32 %v471, 4294901760
        %v1346 = vsub.f32 %v471, %v1345
        %1347 = vmatmul.f32.gmra.mxu0 %v1346
        %v1348 = vpop.f32.mrf.mxu0
        %v1349 = vadd.f32 %v1295, %v1348
        %1350 = vdwg.mxu0
        %v1351 = vand.u32 %v436, 4294901760
        %1352 = vmatpush.msra.mxu0 %v1351
        %v1353 = vand.u32 %v434, 4294901760
        %1354 = vmatpush.msra.mxu0 %v1353
        %v1355 = vand.u32 %v432, 4294901760
        %1356 = vmatpush.msra.mxu0 %v1355
        %v1357 = vand.u32 %v430, 4294901760
        %1358 = vmatpush.msra.mxu0 %v1357
        %v1359 = vand.u32 %v428, 4294901760
        %1360 = vmatpush.msra.mxu0 %v1359
        %v1361 = vand.u32 %v426, 4294901760
        %1362 = vmatpush.msra.mxu0 %v1361
        %v1363 = vand.u32 %v424, 4294901760
        %1364 = vmatpush.msra.mxu0 %v1363
        %v1365 = vand.u32 %v422, 4294901760
        %1366 = vmatpush.msra.mxu0 %v1365
        %v1367 = vand.u32 %v420, 4294901760
        %1368 = vmatpush.msra.mxu0 %v1367
        %v1369 = vand.u32 %v418, 4294901760
        %1370 = vmatpush.msra.mxu0 %v1369
        %v1371 = vand.u32 %v416, 4294901760
        %1372 = vmatpush.msra.mxu0 %v1371
        %v1373 = vand.u32 %v414, 4294901760
        %1374 = vmatpush.msra.mxu0 %v1373
        %v1375 = vand.u32 %v412, 4294901760
        %1376 = vmatpush.msra.mxu0 %v1375
        %v1377 = vand.u32 %v410, 4294901760
        %1378 = vmatpush.msra.mxu0 %v1377
        %v1379 = vand.u32 %v408, 4294901760
        %1380 = vmatpush.msra.mxu0 %v1379
        %v1381 = vand.u32 %v406, 4294901760
        %1382 = vmatpush.msra.mxu0 %v1381
        %v1383 = vand.u32 %v471, 4294901760
        %v1384 = vsub.f32 %v471, %v1383
        %v1385 = vand.u32 %v1384, 4294901760
        %1386 = vmatmul.f32.gmra.mxu0 %v1385
        %v1387 = vpop.f32.mrf.mxu0
        %v1388 = vadd.f32 %v1349, %v1387
        %1389 = vdwg.mxu0
        %v1390 = vand.u32 %v436, 4294901760
        %v1391 = vsub.f32 %v436, %v1390
        %v1392 = vand.u32 %v1391, 4294901760
        %1393 = vmatpush.msra.mxu0 %v1392
        %v1394 = vand.u32 %v434, 4294901760
        %v1395 = vsub.f32 %v434, %v1394
        %v1396 = vand.u32 %v1395, 4294901760
        %1397 = vmatpush.msra.mxu0 %v1396
        %v1398 = vand.u32 %v432, 4294901760
        %v1399 = vsub.f32 %v432, %v1398
        %v1400 = vand.u32 %v1399, 4294901760
        %1401 = vmatpush.msra.mxu0 %v1400
        %v1402 = vand.u32 %v430, 4294901760
        %v1403 = vsub.f32 %v430, %v1402
        %v1404 = vand.u32 %v1403, 4294901760
        %1405 = vmatpush.msra.mxu0 %v1404
        %v1406 = vand.u32 %v428, 4294901760
        %v1407 = vsub.f32 %v428, %v1406
        %v1408 = vand.u32 %v1407, 4294901760
        %1409 = vmatpush.msra.mxu0 %v1408
        %v1410 = vand.u32 %v426, 4294901760
        %v1411 = vsub.f32 %v426, %v1410
        %v1412 = vand.u32 %v1411, 4294901760
        %1413 = vmatpush.msra.mxu0 %v1412
        %v1414 = vand.u32 %v424, 4294901760
        %v1415 = vsub.f32 %v424, %v1414
        %v1416 = vand.u32 %v1415, 4294901760
        %1417 = vmatpush.msra.mxu0 %v1416
        %v1418 = vand.u32 %v422, 4294901760
        %v1419 = vsub.f32 %v422, %v1418
        %v1420 = vand.u32 %v1419, 4294901760
        %1421 = vmatpush.msra.mxu0 %v1420
        %v1422 = vand.u32 %v420, 4294901760
        %v1423 = vsub.f32 %v420, %v1422
        %v1424 = vand.u32 %v1423, 4294901760
        %1425 = vmatpush.msra.mxu0 %v1424
        %v1426 = vand.u32 %v418, 4294901760
        %v1427 = vsub.f32 %v418, %v1426
        %v1428 = vand.u32 %v1427, 4294901760
        %1429 = vmatpush.msra.mxu0 %v1428
        %v1430 = vand.u32 %v416, 4294901760
        %v1431 = vsub.f32 %v416, %v1430
        %v1432 = vand.u32 %v1431, 4294901760
        %1433 = vmatpush.msra.mxu0 %v1432
        %v1434 = vand.u32 %v414, 4294901760
        %v1435 = vsub.f32 %v414, %v1434
        %v1436 = vand.u32 %v1435, 4294901760
        %1437 = vmatpush.msra.mxu0 %v1436
        %v1438 = vand.u32 %v412, 4294901760
        %v1439 = vsub.f32 %v412, %v1438
        %v1440 = vand.u32 %v1439, 4294901760
        %1441 = vmatpush.msra.mxu0 %v1440
        %v1442 = vand.u32 %v410, 4294901760
        %v1443 = vsub.f32 %v410, %v1442
        %v1444 = vand.u32 %v1443, 4294901760
        %1445 = vmatpush.msra.mxu0 %v1444
        %v1446 = vand.u32 %v408, 4294901760
        %v1447 = vsub.f32 %v408, %v1446
        %v1448 = vand.u32 %v1447, 4294901760
        %1449 = vmatpush.msra.mxu0 %v1448
        %v1450 = vand.u32 %v406, 4294901760
        %v1451 = vsub.f32 %v406, %v1450
        %v1452 = vand.u32 %v1451, 4294901760
        %1453 = vmatpush.msra.mxu0 %v1452
        %v1454 = vand.u32 %v471, 4294901760
        %1455 = vmatmul.f32.gmra.mxu0 %v1454
        %v1456 = vpop.f32.mrf.mxu0
        %v1457 = vadd.f32 %v1388, %v1456
        %1458 = vdwg.mxu0
        %v1459 = vand.u32 %v436, 4294901760
        %1460 = vmatpush.msra.mxu0 %v1459
        %v1461 = vand.u32 %v434, 4294901760
        %1462 = vmatpush.msra.mxu0 %v1461
        %v1463 = vand.u32 %v432, 4294901760
        %1464 = vmatpush.msra.mxu0 %v1463
        %v1465 = vand.u32 %v430, 4294901760
        %1466 = vmatpush.msra.mxu0 %v1465
        %v1467 = vand.u32 %v428, 4294901760
        %1468 = vmatpush.msra.mxu0 %v1467
        %v1469 = vand.u32 %v426, 4294901760
        %1470 = vmatpush.msra.mxu0 %v1469
        %v1471 = vand.u32 %v424, 4294901760
        %1472 = vmatpush.msra.mxu0 %v1471
        %v1473 = vand.u32 %v422, 4294901760
        %1474 = vmatpush.msra.mxu0 %v1473
        %v1475 = vand.u32 %v420, 4294901760
        %1476 = vmatpush.msra.mxu0 %v1475
        %v1477 = vand.u32 %v418, 4294901760
        %1478 = vmatpush.msra.mxu0 %v1477
        %v1479 = vand.u32 %v416, 4294901760
        %1480 = vmatpush.msra.mxu0 %v1479
        %v1481 = vand.u32 %v414, 4294901760
        %1482 = vmatpush.msra.mxu0 %v1481
        %v1483 = vand.u32 %v412, 4294901760
        %1484 = vmatpush.msra.mxu0 %v1483
        %v1485 = vand.u32 %v410, 4294901760
        %1486 = vmatpush.msra.mxu0 %v1485
        %v1487 = vand.u32 %v408, 4294901760
        %1488 = vmatpush.msra.mxu0 %v1487
        %v1489 = vand.u32 %v406, 4294901760
        %1490 = vmatpush.msra.mxu0 %v1489
        %v1491 = vand.u32 %v471, 4294901760
        %1492 = vmatmul.f32.gmra.mxu0 %v1491
        %v1493 = vpop.f32.mrf.mxu0
        %v1494 = vadd.f32 %v1457, %v1493
        %1495 = vdwg.mxu0
        %v1496 = vand.u32 %v468, 4294901760
        %1497 = vmatpush.msra.mxu0 %v1496
        %v1498 = vand.u32 %v466, 4294901760
        %1499 = vmatpush.msra.mxu0 %v1498
        %v1500 = vand.u32 %v464, 4294901760
        %1501 = vmatpush.msra.mxu0 %v1500
        %v1502 = vand.u32 %v462, 4294901760
        %1503 = vmatpush.msra.mxu0 %v1502
        %v1504 = vand.u32 %v460, 4294901760
        %1505 = vmatpush.msra.mxu0 %v1504
        %v1506 = vand.u32 %v458, 4294901760
        %1507 = vmatpush.msra.mxu0 %v1506
        %v1508 = vand.u32 %v456, 4294901760
        %1509 = vmatpush.msra.mxu0 %v1508
        %v1510 = vand.u32 %v454, 4294901760
        %1511 = vmatpush.msra.mxu0 %v1510
        %v1512 = vand.u32 %v452, 4294901760
        %1513 = vmatpush.msra.mxu0 %v1512
        %v1514 = vand.u32 %v450, 4294901760
        %1515 = vmatpush.msra.mxu0 %v1514
        %v1516 = vand.u32 %v448, 4294901760
        %1517 = vmatpush.msra.mxu0 %v1516
        %v1518 = vand.u32 %v446, 4294901760
        %1519 = vmatpush.msra.mxu0 %v1518
        %v1520 = vand.u32 %v444, 4294901760
        %1521 = vmatpush.msra.mxu0 %v1520
        %v1522 = vand.u32 %v442, 4294901760
        %1523 = vmatpush.msra.mxu0 %v1522
        %v1524 = vand.u32 %v440, 4294901760
        %1525 = vmatpush.msra.mxu0 %v1524
        %v1526 = vand.u32 %v438, 4294901760
        %1527 = vmatpush.msra.mxu0 %v1526
        %v1528 = vand.u32 %v472, 4294901760
        %v1529 = vsub.f32 %v472, %v1528
        %v1530 = vand.u32 %v1529, 4294901760
        %v1531 = vsub.f32 %v1529, %v1530
        %v1532 = vand.u32 %v1531, 4294901760
        %1533 = vmatmul.f32.gmra.mxu0 %v1532
        %v1534 = vpop.f32.mrf.mxu0
        %v1535 = vadd.f32 %v1494, %v1534
        %1536 = vdwg.mxu0
        %v1537 = vand.u32 %v468, 4294901760
        %v1538 = vsub.f32 %v468, %v1537
        %v1539 = vand.u32 %v1538, 4294901760
        %v1540 = vsub.f32 %v1538, %v1539
        %v1541 = vand.u32 %v1540, 4294901760
        %1542 = vmatpush.msra.mxu0 %v1541
        %v1543 = vand.u32 %v466, 4294901760
        %v1544 = vsub.f32 %v466, %v1543
        %v1545 = vand.u32 %v1544, 4294901760
        %v1546 = vsub.f32 %v1544, %v1545
        %v1547 = vand.u32 %v1546, 4294901760
        %1548 = vmatpush.msra.mxu0 %v1547
        %v1549 = vand.u32 %v464, 4294901760
        %v1550 = vsub.f32 %v464, %v1549
        %v1551 = vand.u32 %v1550, 4294901760
        %v1552 = vsub.f32 %v1550, %v1551
        %v1553 = vand.u32 %v1552, 4294901760
        %1554 = vmatpush.msra.mxu0 %v1553
        %v1555 = vand.u32 %v462, 4294901760
        %v1556 = vsub.f32 %v462, %v1555
        %v1557 = vand.u32 %v1556, 4294901760
        %v1558 = vsub.f32 %v1556, %v1557
        %v1559 = vand.u32 %v1558, 4294901760
        %1560 = vmatpush.msra.mxu0 %v1559
        %v1561 = vand.u32 %v460, 4294901760
        %v1562 = vsub.f32 %v460, %v1561
        %v1563 = vand.u32 %v1562, 4294901760
        %v1564 = vsub.f32 %v1562, %v1563
        %v1565 = vand.u32 %v1564, 4294901760
        %1566 = vmatpush.msra.mxu0 %v1565
        %v1567 = vand.u32 %v458, 4294901760
        %v1568 = vsub.f32 %v458, %v1567
        %v1569 = vand.u32 %v1568, 4294901760
        %v1570 = vsub.f32 %v1568, %v1569
        %v1571 = vand.u32 %v1570, 4294901760
        %1572 = vmatpush.msra.mxu0 %v1571
        %v1573 = vand.u32 %v456, 4294901760
        %v1574 = vsub.f32 %v456, %v1573
        %v1575 = vand.u32 %v1574, 4294901760
        %v1576 = vsub.f32 %v1574, %v1575
        %v1577 = vand.u32 %v1576, 4294901760
        %1578 = vmatpush.msra.mxu0 %v1577
        %v1579 = vand.u32 %v454, 4294901760
        %v1580 = vsub.f32 %v454, %v1579
        %v1581 = vand.u32 %v1580, 4294901760
        %v1582 = vsub.f32 %v1580, %v1581
        %v1583 = vand.u32 %v1582, 4294901760
        %1584 = vmatpush.msra.mxu0 %v1583
        %v1585 = vand.u32 %v452, 4294901760
        %v1586 = vsub.f32 %v452, %v1585
        %v1587 = vand.u32 %v1586, 4294901760
        %v1588 = vsub.f32 %v1586, %v1587
        %v1589 = vand.u32 %v1588, 4294901760
        %1590 = vmatpush.msra.mxu0 %v1589
        %v1591 = vand.u32 %v450, 4294901760
        %v1592 = vsub.f32 %v450, %v1591
        %v1593 = vand.u32 %v1592, 4294901760
        %v1594 = vsub.f32 %v1592, %v1593
        %v1595 = vand.u32 %v1594, 4294901760
        %1596 = vmatpush.msra.mxu0 %v1595
        %v1597 = vand.u32 %v448, 4294901760
        %v1598 = vsub.f32 %v448, %v1597
        %v1599 = vand.u32 %v1598, 4294901760
        %v1600 = vsub.f32 %v1598, %v1599
        %v1601 = vand.u32 %v1600, 4294901760
        %1602 = vmatpush.msra.mxu0 %v1601
        %v1603 = vand.u32 %v446, 4294901760
        %v1604 = vsub.f32 %v446, %v1603
        %v1605 = vand.u32 %v1604, 4294901760
        %v1606 = vsub.f32 %v1604, %v1605
        %v1607 = vand.u32 %v1606, 4294901760
        %1608 = vmatpush.msra.mxu0 %v1607
        %v1609 = vand.u32 %v444, 4294901760
        %v1610 = vsub.f32 %v444, %v1609
        %v1611 = vand.u32 %v1610, 4294901760
        %v1612 = vsub.f32 %v1610, %v1611
        %v1613 = vand.u32 %v1612, 4294901760
        %1614 = vmatpush.msra.mxu0 %v1613
        %v1615 = vand.u32 %v442, 4294901760
        %v1616 = vsub.f32 %v442, %v1615
        %v1617 = vand.u32 %v1616, 4294901760
        %v1618 = vsub.f32 %v1616, %v1617
        %v1619 = vand.u32 %v1618, 4294901760
        %1620 = vmatpush.msra.mxu0 %v1619
        %v1621 = vand.u32 %v440, 4294901760
        %v1622 = vsub.f32 %v440, %v1621
        %v1623 = vand.u32 %v1622, 4294901760
        %v1624 = vsub.f32 %v1622, %v1623
        %v1625 = vand.u32 %v1624, 4294901760
        %1626 = vmatpush.msra.mxu0 %v1625
        %v1627 = vand.u32 %v438, 4294901760
        %v1628 = vsub.f32 %v438, %v1627
        %v1629 = vand.u32 %v1628, 4294901760
        %v1630 = vsub.f32 %v1628, %v1629
        %v1631 = vand.u32 %v1630, 4294901760
        %1632 = vmatpush.msra.mxu0 %v1631
        %v1633 = vand.u32 %v472, 4294901760
        %1634 = vmatmul.f32.gmra.mxu0 %v1633
        %v1635 = vpop.f32.mrf.mxu0
        %v1636 = vadd.f32 %v1535, %v1635
        %1637 = vdwg.mxu0
        %v1638 = vand.u32 %v468, 4294901760
        %v1639 = vsub.f32 %v468, %v1638
        %1640 = vmatpush.msra.mxu0 %v1639
        %v1641 = vand.u32 %v466, 4294901760
        %v1642 = vsub.f32 %v466, %v1641
        %1643 = vmatpush.msra.mxu0 %v1642
        %v1644 = vand.u32 %v464, 4294901760
        %v1645 = vsub.f32 %v464, %v1644
        %1646 = vmatpush.msra.mxu0 %v1645
        %v1647 = vand.u32 %v462, 4294901760
        %v1648 = vsub.f32 %v462, %v1647
        %1649 = vmatpush.msra.mxu0 %v1648
        %v1650 = vand.u32 %v460, 4294901760
        %v1651 = vsub.f32 %v460, %v1650
        %1652 = vmatpush.msra.mxu0 %v1651
        %v1653 = vand.u32 %v458, 4294901760
        %v1654 = vsub.f32 %v458, %v1653
        %1655 = vmatpush.msra.mxu0 %v1654
        %v1656 = vand.u32 %v456, 4294901760
        %v1657 = vsub.f32 %v456, %v1656
        %1658 = vmatpush.msra.mxu0 %v1657
        %v1659 = vand.u32 %v454, 4294901760
        %v1660 = vsub.f32 %v454, %v1659
        %1661 = vmatpush.msra.mxu0 %v1660
        %v1662 = vand.u32 %v452, 4294901760
        %v1663 = vsub.f32 %v452, %v1662
        %1664 = vmatpush.msra.mxu0 %v1663
        %v1665 = vand.u32 %v450, 4294901760
        %v1666 = vsub.f32 %v450, %v1665
        %1667 = vmatpush.msra.mxu0 %v1666
        %v1668 = vand.u32 %v448, 4294901760
        %v1669 = vsub.f32 %v448, %v1668
        %1670 = vmatpush.msra.mxu0 %v1669
        %v1671 = vand.u32 %v446, 4294901760
        %v1672 = vsub.f32 %v446, %v1671
        %1673 = vmatpush.msra.mxu0 %v1672
        %v1674 = vand.u32 %v444, 4294901760
        %v1675 = vsub.f32 %v444, %v1674
        %1676 = vmatpush.msra.mxu0 %v1675
        %v1677 = vand.u32 %v442, 4294901760
        %v1678 = vsub.f32 %v442, %v1677
        %1679 = vmatpush.msra.mxu0 %v1678
        %v1680 = vand.u32 %v440, 4294901760
        %v1681 = vsub.f32 %v440, %v1680
        %1682 = vmatpush.msra.mxu0 %v1681
        %v1683 = vand.u32 %v438, 4294901760
        %v1684 = vsub.f32 %v438, %v1683
        %1685 = vmatpush.msra.mxu0 %v1684
        %v1686 = vand.u32 %v472, 4294901760
        %v1687 = vsub.f32 %v472, %v1686
        %1688 = vmatmul.f32.gmra.mxu0 %v1687
        %v1689 = vpop.f32.mrf.mxu0
        %v1690 = vadd.f32 %v1636, %v1689
        %1691 = vdwg.mxu0
        %v1692 = vand.u32 %v468, 4294901760
        %1693 = vmatpush.msra.mxu0 %v1692
        %v1694 = vand.u32 %v466, 4294901760
        %1695 = vmatpush.msra.mxu0 %v1694
        %v1696 = vand.u32 %v464, 4294901760
        %1697 = vmatpush.msra.mxu0 %v1696
        %v1698 = vand.u32 %v462, 4294901760
        %1699 = vmatpush.msra.mxu0 %v1698
        %v1700 = vand.u32 %v460, 4294901760
        %1701 = vmatpush.msra.mxu0 %v1700
        %v1702 = vand.u32 %v458, 4294901760
        %1703 = vmatpush.msra.mxu0 %v1702
        %v1704 = vand.u32 %v456, 4294901760
        %1705 = vmatpush.msra.mxu0 %v1704
        %v1706 = vand.u32 %v454, 4294901760
        %1707 = vmatpush.msra.mxu0 %v1706
        %v1708 = vand.u32 %v452, 4294901760
        %1709 = vmatpush.msra.mxu0 %v1708
        %v1710 = vand.u32 %v450, 4294901760
        %1711 = vmatpush.msra.mxu0 %v1710
        %v1712 = vand.u32 %v448, 4294901760
        %1713 = vmatpush.msra.mxu0 %v1712
        %v1714 = vand.u32 %v446, 4294901760
        %1715 = vmatpush.msra.mxu0 %v1714
        %v1716 = vand.u32 %v444, 4294901760
        %1717 = vmatpush.msra.mxu0 %v1716
        %v1718 = vand.u32 %v442, 4294901760
        %1719 = vmatpush.msra.mxu0 %v1718
        %v1720 = vand.u32 %v440, 4294901760
        %1721 = vmatpush.msra.mxu0 %v1720
        %v1722 = vand.u32 %v438, 4294901760
        %1723 = vmatpush.msra.mxu0 %v1722
        %v1724 = vand.u32 %v472, 4294901760
        %v1725 = vsub.f32 %v472, %v1724
        %v1726 = vand.u32 %v1725, 4294901760
        %1727 = vmatmul.f32.gmra.mxu0 %v1726
        %v1728 = vpop.f32.mrf.mxu0
        %v1729 = vadd.f32 %v1690, %v1728
        %1730 = vdwg.mxu0
        %v1731 = vand.u32 %v468, 4294901760
        %v1732 = vsub.f32 %v468, %v1731
        %v1733 = vand.u32 %v1732, 4294901760
        %1734 = vmatpush.msra.mxu0 %v1733
        %v1735 = vand.u32 %v466, 4294901760
        %v1736 = vsub.f32 %v466, %v1735
        %v1737 = vand.u32 %v1736, 4294901760
        %1738 = vmatpush.msra.mxu0 %v1737
        %v1739 = vand.u32 %v464, 4294901760
        %v1740 = vsub.f32 %v464, %v1739
        %v1741 = vand.u32 %v1740, 4294901760
        %1742 = vmatpush.msra.mxu0 %v1741
        %v1743 = vand.u32 %v462, 4294901760
        %v1744 = vsub.f32 %v462, %v1743
        %v1745 = vand.u32 %v1744, 4294901760
        %1746 = vmatpush.msra.mxu0 %v1745
        %v1747 = vand.u32 %v460, 4294901760
        %v1748 = vsub.f32 %v460, %v1747
        %v1749 = vand.u32 %v1748, 4294901760
        %1750 = vmatpush.msra.mxu0 %v1749
        %v1751 = vand.u32 %v458, 4294901760
        %v1752 = vsub.f32 %v458, %v1751
        %v1753 = vand.u32 %v1752, 4294901760
        %1754 = vmatpush.msra.mxu0 %v1753
        %v1755 = vand.u32 %v456, 4294901760
        %v1756 = vsub.f32 %v456, %v1755
        %v1757 = vand.u32 %v1756, 4294901760
        %1758 = vmatpush.msra.mxu0 %v1757
        %v1759 = vand.u32 %v454, 4294901760
        %v1760 = vsub.f32 %v454, %v1759
        %v1761 = vand.u32 %v1760, 4294901760
        %1762 = vmatpush.msra.mxu0 %v1761
        %v1763 = vand.u32 %v452, 4294901760
        %v1764 = vsub.f32 %v452, %v1763
        %v1765 = vand.u32 %v1764, 4294901760
        %1766 = vmatpush.msra.mxu0 %v1765
        %v1767 = vand.u32 %v450, 4294901760
        %v1768 = vsub.f32 %v450, %v1767
        %v1769 = vand.u32 %v1768, 4294901760
        %1770 = vmatpush.msra.mxu0 %v1769
        %v1771 = vand.u32 %v448, 4294901760
        %v1772 = vsub.f32 %v448, %v1771
        %v1773 = vand.u32 %v1772, 4294901760
        %1774 = vmatpush.msra.mxu0 %v1773
        %v1775 = vand.u32 %v446, 4294901760
        %v1776 = vsub.f32 %v446, %v1775
        %v1777 = vand.u32 %v1776, 4294901760
        %1778 = vmatpush.msra.mxu0 %v1777
        %v1779 = vand.u32 %v444, 4294901760
        %v1780 = vsub.f32 %v444, %v1779
        %v1781 = vand.u32 %v1780, 4294901760
        %1782 = vmatpush.msra.mxu0 %v1781
        %v1783 = vand.u32 %v442, 4294901760
        %v1784 = vsub.f32 %v442, %v1783
        %v1785 = vand.u32 %v1784, 4294901760
        %1786 = vmatpush.msra.mxu0 %v1785
        %v1787 = vand.u32 %v440, 4294901760
        %v1788 = vsub.f32 %v440, %v1787
        %v1789 = vand.u32 %v1788, 4294901760
        %1790 = vmatpush.msra.mxu0 %v1789
        %v1791 = vand.u32 %v438, 4294901760
        %v1792 = vsub.f32 %v438, %v1791
        %v1793 = vand.u32 %v1792, 4294901760
        %1794 = vmatpush.msra.mxu0 %v1793
        %v1795 = vand.u32 %v472, 4294901760
        %1796 = vmatmul.f32.gmra.mxu0 %v1795
        %v1797 = vpop.f32.mrf.mxu0
        %v1798 = vadd.f32 %v1729, %v1797
        %1799 = vdwg.mxu0
        %v1800 = vand.u32 %v468, 4294901760
        %1801 = vmatpush.msra.mxu0 %v1800
        %v1802 = vand.u32 %v466, 4294901760
        %1803 = vmatpush.msra.mxu0 %v1802
        %v1804 = vand.u32 %v464, 4294901760
        %1805 = vmatpush.msra.mxu0 %v1804
        %v1806 = vand.u32 %v462, 4294901760
        %1807 = vmatpush.msra.mxu0 %v1806
        %v1808 = vand.u32 %v460, 4294901760
        %1809 = vmatpush.msra.mxu0 %v1808
        %v1810 = vand.u32 %v458, 4294901760
        %1811 = vmatpush.msra.mxu0 %v1810
        %v1812 = vand.u32 %v456, 4294901760
        %1813 = vmatpush.msra.mxu0 %v1812
        %v1814 = vand.u32 %v454, 4294901760
        %1815 = vmatpush.msra.mxu0 %v1814
        %v1816 = vand.u32 %v452, 4294901760
        %1817 = vmatpush.msra.mxu0 %v1816
        %v1818 = vand.u32 %v450, 4294901760
        %1819 = vmatpush.msra.mxu0 %v1818
        %v1820 = vand.u32 %v448, 4294901760
        %1821 = vmatpush.msra.mxu0 %v1820
        %v1822 = vand.u32 %v446, 4294901760
        %1823 = vmatpush.msra.mxu0 %v1822
        %v1824 = vand.u32 %v444, 4294901760
        %1825 = vmatpush.msra.mxu0 %v1824
        %v1826 = vand.u32 %v442, 4294901760
        %1827 = vmatpush.msra.mxu0 %v1826
        %v1828 = vand.u32 %v440, 4294901760
        %1829 = vmatpush.msra.mxu0 %v1828
        %v1830 = vand.u32 %v438, 4294901760
        %1831 = vmatpush.msra.mxu0 %v1830
        %v1832 = vand.u32 %v472, 4294901760
        %1833 = vmatmul.f32.gmra.mxu0 %v1832
        %v1834 = vpop.f32.mrf.mxu0
        %v1835 = vadd.f32 %v1798, %v1834
        %1836 = vdwg.mxu0
        %1838 = vset.pattern.permute.xlu0 0
        %1839 = vperm.xlu0 %1838, %v400
        %v1840 = vpop.permute.xlu0 %1839
        %v1842 = vadd.f32 %v1840, %v1153
        %v1843 = vadd.f32 %v1840, %v1835
        %1845 = vset.pattern.permute.xlu0 0
        %1846 = vperm.xlu0 %1845, %v401
        %v1847 = vpop.permute.xlu0 %1846
        %1850 = vset.pattern.permute.xlu0 0
        %1851 = vperm.xlu0 %1850, %v402
        %v1852 = vpop.permute.xlu0 %1851
        %v1854 = vmul.f32 %v1847, %v1842
        %v1855 = vmul.f32 %v1847, %v1843
        %v1856 = vmul.f32 %v1852, %v1842
        %v1857 = vmul.f32 %v1852, %v1843
        %1859 = vset.pattern.permute.xlu0 0
        %1860 = vperm.xlu0 %1859, %v403
        %v1861 = vpop.permute.xlu0 %1860
        %1864 = vset.pattern.permute.xlu0 0
        %1865 = vperm.xlu0 %1864, %v404
        %v1866 = vpop.permute.xlu0 %1865
        %v1868 = vadd.f32 %v1854, %v1861
        %v1869 = vadd.f32 %v1855, %v1861
        %v1870 = vadd.f32 %v1856, %v1866
        %v1871 = vadd.f32 %v1857, %v1866
        %v1872 = vmul.f32 %v1868, 6.2831855
        %v1873 = vmul.f32 %v1869, 6.2831855
        %v1874 = vmul.f32 %v1870, 6.2831855
        %v1875 = vmul.f32 %v1871, 6.2831855
        %v1876 = vand.u32 2147483647, %v1872
        %vm1877 = vcmp.le.f32.partialorder %v1876, 0.7853982
        %vm1878 = vcmp.lt.s32.totalorder %v1872, 0
        %v1879 = vand.u32 %v1872, 2139095040
        %v1880 = vshrl.u32 %v1879, 23
        %v1881 = vsub.s32 %v1880, 127
        %v1882 = vand.u32 2147483647, %v1872
        %v1883 = vand.u32 %v1882, 8388607
        %v1884 = vor.u32 %v1883, 8388608
        %v1885 = vsub.s32 0, %v1884
        %v1886 = vadd.s32 %v1881, 1
        %vm1887 = vcmp.gt.s32.totalorder %v1886, 0
        %v1888 = vsel %vm1887, %v1886, 0
        %v1889 = vshrl.u32 %v1888, 5
        %v1890 = vand.u32 %v1888, 31
        %v1891 = vsub.s32 32, %v1890
        %v1892 = vshrl.u32 683565275, %v1891
        %v1893 = vshll.u32 683565275, %v1890
        %v1894 = vshrl.u32 2475754826, %v1891
        %v1895 = vor.u32 %v1893, %v1894
        %v1896 = vshll.u32 2475754826, %v1890
        %v1897 = vshrl.u32 2131351028, %v1891
        %v1898 = vor.u32 %v1896, %v1897
        %v1899 = vshll.u32 2131351028, %v1890
        %v1900 = vshrl.u32 2102212464, %v1891
        %v1901 = vor.u32 %v1899, %v1900
        %v1902 = vshll.u32 2102212464, %v1890
        %v1903 = vshrl.u32 920167782, %v1891
        %v1904 = vor.u32 %v1902, %v1903
        %v1905 = vshll.u32 920167782, %v1890
        %v1906 = vshrl.u32 1326507024, %v1891
        %v1907 = vor.u32 %v1905, %v1906
        %vm1908 = vcmp.lt.s32.totalorder %v1889, 1
        %vm1909 = vcmp.lt.s32.totalorder %v1889, 2
        %vm1910 = vcmp.lt.s32.totalorder %v1889, 3
        %vm1911 = vcmp.lt.s32.totalorder %v1889, 4
        %v1912 = vsel %vm1908, %v1892, %v1895
        %v1913 = vsel %vm1911, %v1901, 2102212464
        %v1914 = vsel %vm1910, %v1898, %v1913
        %v1915 = vsel %vm1909, %v1912, %v1914
        %v1916 = vsel %vm1908, %v1895, %v1898
        %v1917 = vsel %vm1911, %v1904, 920167782
        %v1918 = vsel %vm1910, %v1901, %v1917
        %v1919 = vsel %vm1909, %v1916, %v1918
        %v1920 = vsel %vm1908, %v1898, %v1901
        %v1921 = vsel %vm1911, %v1907, 1326507024
        %v1922 = vsel %vm1910, %v1904, %v1921
        %v1923 = vsel %vm1909, %v1920, %v1922
        %v1924 = vshll.u32 %v1884, 8
        %v1925 = vand.u32 %v1924, 65535
        %v1926 = vshrl.u32 %v1924, 16
        %v1927 = vand.u32 %v1923, 65535
        %v1928 = vshrl.u32 %v1923, 16
        %v1929 = vmul.u32 %v1925, %v1927
        %v1930 = vmul.u32 %v1925, %v1928
        %v1931 = vmul.u32 %v1926, %v1927
        %v1932 = vmul.u32 %v1926, %v1928
        %v1933 = vshll.u32 %v1930, 16
        %v1934 = vshrl.u32 %v1930, 16
        %v1935 = vshll.u32 %v1931, 16
        %v1936 = vshrl.u32 %v1931, 16
        %vm1937 = vc.u32 %v1929, %v1933
        %v1938 = vsel %vm1937, 1, 0
        %v1939 = vadd.s32 %v1929, %v1933
        %v1940 = vadd.s32 %v1932, %v1938
        %vm1941 = vc.u32 %v1939, %v1935
        %v1942 = vsel %vm1941, 1, 0
        %v1943 = vadd.s32 %v1939, %v1935
        %v1944 = vadd.s32 %v1940, %v1942
        %v1945 = vadd.s32 %v1944, %v1934
        %v1946 = vadd.s32 %v1945, %v1936
        %v1947 = vand.u32 %v1924, 65535
        %v1948 = vshrl.u32 %v1924, 16
        %v1949 = vand.u32 %v1919, 65535
        %v1950 = vshrl.u32 %v1919, 16
        %v1951 = vmul.u32 %v1947, %v1949
        %v1952 = vmul.u32 %v1947, %v1950
        %v1953 = vmul.u32 %v1948, %v1949
        %v1954 = vmul.u32 %v1948, %v1950
        %v1955 = vshll.u32 %v1952, 16
        %v1956 = vshrl.u32 %v1952, 16
        %v1957 = vshll.u32 %v1953, 16
        %v1958 = vshrl.u32 %v1953, 16
        %vm1959 = vc.u32 %v1951, %v1955
        %v1960 = vsel %vm1959, 1, 0
        %v1961 = vadd.s32 %v1951, %v1955
        %v1962 = vadd.s32 %v1954, %v1960
        %vm1963 = vc.u32 %v1961, %v1957
        %v1964 = vsel %vm1963, 1, 0
        %v1965 = vadd.s32 %v1961, %v1957
        %v1966 = vadd.s32 %v1962, %v1964
        %v1967 = vadd.s32 %v1966, %v1956
        %v1968 = vadd.s32 %v1967, %v1958
        %v1969 = vmul.u32 %v1924, %v1915
        %v1970 = vadd.s32 %v1946, %v1965
        %vm1971 = vc.u32 %v1946, %v1965
        %v1972 = vadd.s32 %v1968, 1
        %v1973 = vsel %vm1971, %v1972, %v1968
        %v1974 = vadd.s32 %v1969, %v1973
        %v1975 = vadd.s32 %v1974, 536870912
        %v1976 = vshrl.u32 %v1975, 30
        %v1977 = vshll.u32 %v1976, 30
        %v1978 = vsub.s32 %v1974, %v1977
        %vm1979 = vcmp.lt.s32.totalorder %v1978, 0
        %v1980 = vsub.s32 0, %v1978
        %v1981 = vsel %vm1979, %v1980, %v1978
        %v1982 = vclz %v1981
        %v1983 = vsub.s32 %v1982, 2
        %vm1984 = vcmp.gt.s32.totalorder 0, %v1983
        %v1985 = vsel %vm1984, 0, %v1983
        %v1986 = vsub.s32 32, %v1985
        %v1987 = vshll.u32 %v1978, %v1985
        %v1988 = vshrl.u32 %v1970, %v1986
        %v1989 = vor.u32 %v1987, %v1988
        %v1990 = vsub.s32 4294967266, %v1985
        %v1991 = vadd.s32 %v1990, 127
        %v1992 = vshll.u32 %v1991, 23
        %v1993 = vor.u32 4788187, %v1992
        %v1994 = vand.u32 2147483647, %v1993
        %v1996 = vcvt.s32.f32 %v1989
        %v1997 = vmul.f32 %v1996, %v1994
        %v1998 = vxor.u32 %v1997, 2147483648
        %v1999 = vsel %vm1878, %v1998, %v1997
        %v2000 = vsub.s32 4, %v1976
        %v2001 = vsel %vm1878, %v2000, %v1976
        %v2002 = vsel %vm1877, %v1872, %v1999
        %v2003 = vsel %vm1877, 0, %v2001
        %v2004 = vmul.f32 %v2002, %v2002
        %v2005 = vmul.f32 %v2004, -0.001358992
        %v2006 = vadd.f32 %v2005, 0.041655596
        %v2007 = vmul.f32 %v2004, %v2006
        %v2008 = vadd.f32 %v2007, -0.4999988
        %v2009 = vmul.f32 %v2004, %v2008
        %v2010 = vadd.f32 1.0, %v2009
        %v2011 = vmul.f32 %v2002, %v2002
        %v2012 = vmul.f32 %v2011, -0.00019511016
        %v2013 = vadd.f32 %v2012, 0.008332121
        %v2014 = vmul.f32 %v2011, %v2013
        %v2015 = vadd.f32 %v2014, -0.16666654
        %v2016 = vmul.f32 %v2011, %v2015
        %v2017 = vadd.f32 %v2016, 1.0
        %v2018 = vmul.f32 %v2017, %v2002
        %vm2019 = vweird.f32 %v1872
        %v2020 = vadd.s32 %v2003, 3
        %v2021 = vand.u32 %v2020, 3
        %vm2022 = vcmp.lt.s32.totalorder %v2021, 2
        %vm2023 = vcmp.eq.s32.totalorder %v2021, 0
        %v2024 = vxor.u32 %v2018, 2147483648
        %v2025 = vsel %vm2023, %v2010, %v2024
        %vm2026 = vcmp.eq.s32.totalorder %v2021, 2
        %v2027 = vxor.u32 %v2010, 2147483648
        %v2028 = vsel %vm2026, %v2027, %v2018
        %v2029 = vsel %vm2022, %v2025, %v2028
        %v2030 = vsel %vm2019, nan, %v2029
        %v2031 = vand.u32 2147483647, %v1873
        %vm2032 = vcmp.le.f32.partialorder %v2031, 0.7853982
        %vm2033 = vcmp.lt.s32.totalorder %v1873, 0
        %v2034 = vand.u32 %v1873, 2139095040
        %v2035 = vshrl.u32 %v2034, 23
        %v2036 = vsub.s32 %v2035, 127
        %v2037 = vand.u32 2147483647, %v1873
        %v2038 = vand.u32 %v2037, 8388607
        %v2039 = vor.u32 %v2038, 8388608
        %v2040 = vsub.s32 0, %v2039
        %v2041 = vadd.s32 %v2036, 1
        %vm2042 = vcmp.gt.s32.totalorder %v2041, 0
        %v2043 = vsel %vm2042, %v2041, 0
        %v2044 = vshrl.u32 %v2043, 5
        %v2045 = vand.u32 %v2043, 31
        %v2046 = vsub.s32 32, %v2045
        %v2047 = vshrl.u32 683565275, %v2046
        %v2048 = vshll.u32 683565275, %v2045
        %v2049 = vshrl.u32 2475754826, %v2046
        %v2050 = vor.u32 %v2048, %v2049
        %v2051 = vshll.u32 2475754826, %v2045
        %v2052 = vshrl.u32 2131351028, %v2046
        %v2053 = vor.u32 %v2051, %v2052
        %v2054 = vshll.u32 2131351028, %v2045
        %v2055 = vshrl.u32 2102212464, %v2046
        %v2056 = vor.u32 %v2054, %v2055
        %v2057 = vshll.u32 2102212464, %v2045
        %v2058 = vshrl.u32 920167782, %v2046
        %v2059 = vor.u32 %v2057, %v2058
        %v2060 = vshll.u32 920167782, %v2045
        %v2061 = vshrl.u32 1326507024, %v2046
        %v2062 = vor.u32 %v2060, %v2061
        %vm2063 = vcmp.lt.s32.totalorder %v2044, 1
        %vm2064 = vcmp.lt.s32.totalorder %v2044, 2
        %vm2065 = vcmp.lt.s32.totalorder %v2044, 3
        %vm2066 = vcmp.lt.s32.totalorder %v2044, 4
        %v2067 = vsel %vm2063, %v2047, %v2050
        %v2068 = vsel %vm2066, %v2056, 2102212464
        %v2069 = vsel %vm2065, %v2053, %v2068
        %v2070 = vsel %vm2064, %v2067, %v2069
        %v2071 = vsel %vm2063, %v2050, %v2053
        %v2072 = vsel %vm2066, %v2059, 920167782
        %v2073 = vsel %vm2065, %v2056, %v2072
        %v2074 = vsel %vm2064, %v2071, %v2073
        %v2075 = vsel %vm2063, %v2053, %v2056
        %v2076 = vsel %vm2066, %v2062, 1326507024
        %v2077 = vsel %vm2065, %v2059, %v2076
        %v2078 = vsel %vm2064, %v2075, %v2077
        %v2079 = vshll.u32 %v2039, 8
        %v2080 = vand.u32 %v2079, 65535
        %v2081 = vshrl.u32 %v2079, 16
        %v2082 = vand.u32 %v2078, 65535
        %v2083 = vshrl.u32 %v2078, 16
        %v2084 = vmul.u32 %v2080, %v2082
        %v2085 = vmul.u32 %v2080, %v2083
        %v2086 = vmul.u32 %v2081, %v2082
        %v2087 = vmul.u32 %v2081, %v2083
        %v2088 = vshll.u32 %v2085, 16
        %v2089 = vshrl.u32 %v2085, 16
        %v2090 = vshll.u32 %v2086, 16
        %v2091 = vshrl.u32 %v2086, 16
        %vm2092 = vc.u32 %v2084, %v2088
        %v2093 = vsel %vm2092, 1, 0
        %v2094 = vadd.s32 %v2084, %v2088
        %v2095 = vadd.s32 %v2087, %v2093
        %vm2096 = vc.u32 %v2094, %v2090
        %v2097 = vsel %vm2096, 1, 0
        %v2098 = vadd.s32 %v2094, %v2090
        %v2099 = vadd.s32 %v2095, %v2097
        %v2100 = vadd.s32 %v2099, %v2089
        %v2101 = vadd.s32 %v2100, %v2091
        %v2102 = vand.u32 %v2079, 65535
        %v2103 = vshrl.u32 %v2079, 16
        %v2104 = vand.u32 %v2074, 65535
        %v2105 = vshrl.u32 %v2074, 16
        %v2106 = vmul.u32 %v2102, %v2104
        %v2107 = vmul.u32 %v2102, %v2105
        %v2108 = vmul.u32 %v2103, %v2104
        %v2109 = vmul.u32 %v2103, %v2105
        %v2110 = vshll.u32 %v2107, 16
        %v2111 = vshrl.u32 %v2107, 16
        %v2112 = vshll.u32 %v2108, 16
        %v2113 = vshrl.u32 %v2108, 16
        %vm2114 = vc.u32 %v2106, %v2110
        %v2115 = vsel %vm2114, 1, 0
        %v2116 = vadd.s32 %v2106, %v2110
        %v2117 = vadd.s32 %v2109, %v2115
        %vm2118 = vc.u32 %v2116, %v2112
        %v2119 = vsel %vm2118, 1, 0
        %v2120 = vadd.s32 %v2116, %v2112
        %v2121 = vadd.s32 %v2117, %v2119
        %v2122 = vadd.s32 %v2121, %v2111
        %v2123 = vadd.s32 %v2122, %v2113
        %v2124 = vmul.u32 %v2079, %v2070
        %v2125 = vadd.s32 %v2101, %v2120
        %vm2126 = vc.u32 %v2101, %v2120
        %v2127 = vadd.s32 %v2123, 1
        %v2128 = vsel %vm2126, %v2127, %v2123
        %v2129 = vadd.s32 %v2124, %v2128
        %v2130 = vadd.s32 %v2129, 536870912
        %v2131 = vshrl.u32 %v2130, 30
        %v2132 = vshll.u32 %v2131, 30
        %v2133 = vsub.s32 %v2129, %v2132
        %vm2134 = vcmp.lt.s32.totalorder %v2133, 0
        %v2135 = vsub.s32 0, %v2133
        %v2136 = vsel %vm2134, %v2135, %v2133
        %v2137 = vclz %v2136
        %v2138 = vsub.s32 %v2137, 2
        %vm2139 = vcmp.gt.s32.totalorder 0, %v2138
        %v2140 = vsel %vm2139, 0, %v2138
        %v2141 = vsub.s32 32, %v2140
        %v2142 = vshll.u32 %v2133, %v2140
        %v2143 = vshrl.u32 %v2125, %v2141
        %v2144 = vor.u32 %v2142, %v2143
        %v2145 = vsub.s32 4294967266, %v2140
        %v2146 = vadd.s32 %v2145, 127
        %v2147 = vshll.u32 %v2146, 23
        %v2148 = vor.u32 4788187, %v2147
        %v2149 = vand.u32 2147483647, %v2148
        %v2151 = vcvt.s32.f32 %v2144
        %v2152 = vmul.f32 %v2151, %v2149
        %v2153 = vxor.u32 %v2152, 2147483648
        %v2154 = vsel %vm2033, %v2153, %v2152
        %v2155 = vsub.s32 4, %v2131
        %v2156 = vsel %vm2033, %v2155, %v2131
        %v2157 = vsel %vm2032, %v1873, %v2154
        %v2158 = vsel %vm2032, 0, %v2156
        %v2159 = vmul.f32 %v2157, %v2157
        %v2160 = vmul.f32 %v2159, -0.001358992
        %v2161 = vadd.f32 %v2160, 0.041655596
        %v2162 = vmul.f32 %v2159, %v2161
        %v2163 = vadd.f32 %v2162, -0.4999988
        %v2164 = vmul.f32 %v2159, %v2163
        %v2165 = vadd.f32 1.0, %v2164
        %v2166 = vmul.f32 %v2157, %v2157
        %v2167 = vmul.f32 %v2166, -0.00019511016
        %v2168 = vadd.f32 %v2167, 0.008332121
        %v2169 = vmul.f32 %v2166, %v2168
        %v2170 = vadd.f32 %v2169, -0.16666654
        %v2171 = vmul.f32 %v2166, %v2170
        %v2172 = vadd.f32 %v2171, 1.0
        %v2173 = vmul.f32 %v2172, %v2157
        %vm2174 = vweird.f32 %v1873
        %v2175 = vadd.s32 %v2158, 3
        %v2176 = vand.u32 %v2175, 3
        %vm2177 = vcmp.lt.s32.totalorder %v2176, 2
        %vm2178 = vcmp.eq.s32.totalorder %v2176, 0
        %v2179 = vxor.u32 %v2173, 2147483648
        %v2180 = vsel %vm2178, %v2165, %v2179
        %vm2181 = vcmp.eq.s32.totalorder %v2176, 2
        %v2182 = vxor.u32 %v2165, 2147483648
        %v2183 = vsel %vm2181, %v2182, %v2173
        %v2184 = vsel %vm2177, %v2180, %v2183
        %v2185 = vsel %vm2174, nan, %v2184
        %v2186 = vand.u32 2147483647, %v1874
        %vm2187 = vcmp.le.f32.partialorder %v2186, 0.7853982
        %vm2188 = vcmp.lt.s32.totalorder %v1874, 0
        %v2189 = vand.u32 %v1874, 2139095040
        %v2190 = vshrl.u32 %v2189, 23
        %v2191 = vsub.s32 %v2190, 127
        %v2192 = vand.u32 2147483647, %v1874
        %v2193 = vand.u32 %v2192, 8388607
        %v2194 = vor.u32 %v2193, 8388608
        %v2195 = vsub.s32 0, %v2194
        %v2196 = vadd.s32 %v2191, 1
        %vm2197 = vcmp.gt.s32.totalorder %v2196, 0
        %v2198 = vsel %vm2197, %v2196, 0
        %v2199 = vshrl.u32 %v2198, 5
        %v2200 = vand.u32 %v2198, 31
        %v2201 = vsub.s32 32, %v2200
        %v2202 = vshrl.u32 683565275, %v2201
        %v2203 = vshll.u32 683565275, %v2200
        %v2204 = vshrl.u32 2475754826, %v2201
        %v2205 = vor.u32 %v2203, %v2204
        %v2206 = vshll.u32 2475754826, %v2200
        %v2207 = vshrl.u32 2131351028, %v2201
        %v2208 = vor.u32 %v2206, %v2207
        %v2209 = vshll.u32 2131351028, %v2200
        %v2210 = vshrl.u32 2102212464, %v2201
        %v2211 = vor.u32 %v2209, %v2210
        %v2212 = vshll.u32 2102212464, %v2200
        %v2213 = vshrl.u32 920167782, %v2201
        %v2214 = vor.u32 %v2212, %v2213
        %v2215 = vshll.u32 920167782, %v2200
        %v2216 = vshrl.u32 1326507024, %v2201
        %v2217 = vor.u32 %v2215, %v2216
        %vm2218 = vcmp.lt.s32.totalorder %v2199, 1
        %vm2219 = vcmp.lt.s32.totalorder %v2199, 2
        %vm2220 = vcmp.lt.s32.totalorder %v2199, 3
        %vm2221 = vcmp.lt.s32.totalorder %v2199, 4
        %v2222 = vsel %vm2218, %v2202, %v2205
        %v2223 = vsel %vm2221, %v2211, 2102212464
        %v2224 = vsel %vm2220, %v2208, %v2223
        %v2225 = vsel %vm2219, %v2222, %v2224
        %v2226 = vsel %vm2218, %v2205, %v2208
        %v2227 = vsel %vm2221, %v2214, 920167782
        %v2228 = vsel %vm2220, %v2211, %v2227
        %v2229 = vsel %vm2219, %v2226, %v2228
        %v2230 = vsel %vm2218, %v2208, %v2211
        %v2231 = vsel %vm2221, %v2217, 1326507024
        %v2232 = vsel %vm2220, %v2214, %v2231
        %v2233 = vsel %vm2219, %v2230, %v2232
        %v2234 = vshll.u32 %v2194, 8
        %v2235 = vand.u32 %v2234, 65535
        %v2236 = vshrl.u32 %v2234, 16
        %v2237 = vand.u32 %v2233, 65535
        %v2238 = vshrl.u32 %v2233, 16
        %v2239 = vmul.u32 %v2235, %v2237
        %v2240 = vmul.u32 %v2235, %v2238
        %v2241 = vmul.u32 %v2236, %v2237
        %v2242 = vmul.u32 %v2236, %v2238
        %v2243 = vshll.u32 %v2240, 16
        %v2244 = vshrl.u32 %v2240, 16
        %v2245 = vshll.u32 %v2241, 16
        %v2246 = vshrl.u32 %v2241, 16
        %vm2247 = vc.u32 %v2239, %v2243
        %v2248 = vsel %vm2247, 1, 0
        %v2249 = vadd.s32 %v2239, %v2243
        %v2250 = vadd.s32 %v2242, %v2248
        %vm2251 = vc.u32 %v2249, %v2245
        %v2252 = vsel %vm2251, 1, 0
        %v2253 = vadd.s32 %v2249, %v2245
        %v2254 = vadd.s32 %v2250, %v2252
        %v2255 = vadd.s32 %v2254, %v2244
        %v2256 = vadd.s32 %v2255, %v2246
        %v2257 = vand.u32 %v2234, 65535
        %v2258 = vshrl.u32 %v2234, 16
        %v2259 = vand.u32 %v2229, 65535
        %v2260 = vshrl.u32 %v2229, 16
        %v2261 = vmul.u32 %v2257, %v2259
        %v2262 = vmul.u32 %v2257, %v2260
        %v2263 = vmul.u32 %v2258, %v2259
        %v2264 = vmul.u32 %v2258, %v2260
        %v2265 = vshll.u32 %v2262, 16
        %v2266 = vshrl.u32 %v2262, 16
        %v2267 = vshll.u32 %v2263, 16
        %v2268 = vshrl.u32 %v2263, 16
        %vm2269 = vc.u32 %v2261, %v2265
        %v2270 = vsel %vm2269, 1, 0
        %v2271 = vadd.s32 %v2261, %v2265
        %v2272 = vadd.s32 %v2264, %v2270
        %vm2273 = vc.u32 %v2271, %v2267
        %v2274 = vsel %vm2273, 1, 0
        %v2275 = vadd.s32 %v2271, %v2267
        %v2276 = vadd.s32 %v2272, %v2274
        %v2277 = vadd.s32 %v2276, %v2266
        %v2278 = vadd.s32 %v2277, %v2268
        %v2279 = vmul.u32 %v2234, %v2225
        %v2280 = vadd.s32 %v2256, %v2275
        %vm2281 = vc.u32 %v2256, %v2275
        %v2282 = vadd.s32 %v2278, 1
        %v2283 = vsel %vm2281, %v2282, %v2278
        %v2284 = vadd.s32 %v2279, %v2283
        %v2285 = vadd.s32 %v2284, 536870912
        %v2286 = vshrl.u32 %v2285, 30
        %v2287 = vshll.u32 %v2286, 30
        %v2288 = vsub.s32 %v2284, %v2287
        %vm2289 = vcmp.lt.s32.totalorder %v2288, 0
        %v2290 = vsub.s32 0, %v2288
        %v2291 = vsel %vm2289, %v2290, %v2288
        %v2292 = vclz %v2291
        %v2293 = vsub.s32 %v2292, 2
        %vm2294 = vcmp.gt.s32.totalorder 0, %v2293
        %v2295 = vsel %vm2294, 0, %v2293
        %v2296 = vsub.s32 32, %v2295
        %v2297 = vshll.u32 %v2288, %v2295
        %v2298 = vshrl.u32 %v2280, %v2296
        %v2299 = vor.u32 %v2297, %v2298
        %v2300 = vsub.s32 4294967266, %v2295
        %v2301 = vadd.s32 %v2300, 127
        %v2302 = vshll.u32 %v2301, 23
        %v2303 = vor.u32 4788187, %v2302
        %v2304 = vand.u32 2147483647, %v2303
        %v2306 = vcvt.s32.f32 %v2299
        %v2307 = vmul.f32 %v2306, %v2304
        %v2308 = vxor.u32 %v2307, 2147483648
        %v2309 = vsel %vm2188, %v2308, %v2307
        %v2310 = vsub.s32 4, %v2286
        %v2311 = vsel %vm2188, %v2310, %v2286
        %v2312 = vsel %vm2187, %v1874, %v2309
        %v2313 = vsel %vm2187, 0, %v2311
        %v2314 = vmul.f32 %v2312, %v2312
        %v2315 = vmul.f32 %v2314, -0.001358992
        %v2316 = vadd.f32 %v2315, 0.041655596
        %v2317 = vmul.f32 %v2314, %v2316
        %v2318 = vadd.f32 %v2317, -0.4999988
        %v2319 = vmul.f32 %v2314, %v2318
        %v2320 = vadd.f32 1.0, %v2319
        %v2321 = vmul.f32 %v2312, %v2312
        %v2322 = vmul.f32 %v2321, -0.00019511016
        %v2323 = vadd.f32 %v2322, 0.008332121
        %v2324 = vmul.f32 %v2321, %v2323
        %v2325 = vadd.f32 %v2324, -0.16666654
        %v2326 = vmul.f32 %v2321, %v2325
        %v2327 = vadd.f32 %v2326, 1.0
        %v2328 = vmul.f32 %v2327, %v2312
        %vm2329 = vweird.f32 %v1874
        %v2330 = vadd.s32 %v2313, 3
        %v2331 = vand.u32 %v2330, 3
        %vm2332 = vcmp.lt.s32.totalorder %v2331, 2
        %vm2333 = vcmp.eq.s32.totalorder %v2331, 0
        %v2334 = vxor.u32 %v2328, 2147483648
        %v2335 = vsel %vm2333, %v2320, %v2334
        %vm2336 = vcmp.eq.s32.totalorder %v2331, 2
        %v2337 = vxor.u32 %v2320, 2147483648
        %v2338 = vsel %vm2336, %v2337, %v2328
        %v2339 = vsel %vm2332, %v2335, %v2338
        %v2340 = vsel %vm2329, nan, %v2339
        %v2341 = vand.u32 2147483647, %v1875
        %vm2342 = vcmp.le.f32.partialorder %v2341, 0.7853982
        %vm2343 = vcmp.lt.s32.totalorder %v1875, 0
        %v2344 = vand.u32 %v1875, 2139095040
        %v2345 = vshrl.u32 %v2344, 23
        %v2346 = vsub.s32 %v2345, 127
        %v2347 = vand.u32 2147483647, %v1875
        %v2348 = vand.u32 %v2347, 8388607
        %v2349 = vor.u32 %v2348, 8388608
        %v2350 = vsub.s32 0, %v2349
        %v2351 = vadd.s32 %v2346, 1
        %vm2352 = vcmp.gt.s32.totalorder %v2351, 0
        %v2353 = vsel %vm2352, %v2351, 0
        %v2354 = vshrl.u32 %v2353, 5
        %v2355 = vand.u32 %v2353, 31
        %v2356 = vsub.s32 32, %v2355
        %v2357 = vshrl.u32 683565275, %v2356
        %v2358 = vshll.u32 683565275, %v2355
        %v2359 = vshrl.u32 2475754826, %v2356
        %v2360 = vor.u32 %v2358, %v2359
        %v2361 = vshll.u32 2475754826, %v2355
        %v2362 = vshrl.u32 2131351028, %v2356
        %v2363 = vor.u32 %v2361, %v2362
        %v2364 = vshll.u32 2131351028, %v2355
        %v2365 = vshrl.u32 2102212464, %v2356
        %v2366 = vor.u32 %v2364, %v2365
        %v2367 = vshll.u32 2102212464, %v2355
        %v2368 = vshrl.u32 920167782, %v2356
        %v2369 = vor.u32 %v2367, %v2368
        %v2370 = vshll.u32 920167782, %v2355
        %v2371 = vshrl.u32 1326507024, %v2356
        %v2372 = vor.u32 %v2370, %v2371
        %vm2373 = vcmp.lt.s32.totalorder %v2354, 1
        %vm2374 = vcmp.lt.s32.totalorder %v2354, 2
        %vm2375 = vcmp.lt.s32.totalorder %v2354, 3
        %vm2376 = vcmp.lt.s32.totalorder %v2354, 4
        %v2377 = vsel %vm2373, %v2357, %v2360
        %v2378 = vsel %vm2376, %v2366, 2102212464
        %v2379 = vsel %vm2375, %v2363, %v2378
        %v2380 = vsel %vm2374, %v2377, %v2379
        %v2381 = vsel %vm2373, %v2360, %v2363
        %v2382 = vsel %vm2376, %v2369, 920167782
        %v2383 = vsel %vm2375, %v2366, %v2382
        %v2384 = vsel %vm2374, %v2381, %v2383
        %v2385 = vsel %vm2373, %v2363, %v2366
        %v2386 = vsel %vm2376, %v2372, 1326507024
        %v2387 = vsel %vm2375, %v2369, %v2386
        %v2388 = vsel %vm2374, %v2385, %v2387
        %v2389 = vshll.u32 %v2349, 8
        %v2390 = vand.u32 %v2389, 65535
        %v2391 = vshrl.u32 %v2389, 16
        %v2392 = vand.u32 %v2388, 65535
        %v2393 = vshrl.u32 %v2388, 16
        %v2394 = vmul.u32 %v2390, %v2392
        %v2395 = vmul.u32 %v2390, %v2393
        %v2396 = vmul.u32 %v2391, %v2392
        %v2397 = vmul.u32 %v2391, %v2393
        %v2398 = vshll.u32 %v2395, 16
        %v2399 = vshrl.u32 %v2395, 16
        %v2400 = vshll.u32 %v2396, 16
        %v2401 = vshrl.u32 %v2396, 16
        %vm2402 = vc.u32 %v2394, %v2398
        %v2403 = vsel %vm2402, 1, 0
        %v2404 = vadd.s32 %v2394, %v2398
        %v2405 = vadd.s32 %v2397, %v2403
        %vm2406 = vc.u32 %v2404, %v2400
        %v2407 = vsel %vm2406, 1, 0
        %v2408 = vadd.s32 %v2404, %v2400
        %v2409 = vadd.s32 %v2405, %v2407
        %v2410 = vadd.s32 %v2409, %v2399
        %v2411 = vadd.s32 %v2410, %v2401
        %v2412 = vand.u32 %v2389, 65535
        %v2413 = vshrl.u32 %v2389, 16
        %v2414 = vand.u32 %v2384, 65535
        %v2415 = vshrl.u32 %v2384, 16
        %v2416 = vmul.u32 %v2412, %v2414
        %v2417 = vmul.u32 %v2412, %v2415
        %v2418 = vmul.u32 %v2413, %v2414
        %v2419 = vmul.u32 %v2413, %v2415
        %v2420 = vshll.u32 %v2417, 16
        %v2421 = vshrl.u32 %v2417, 16
        %v2422 = vshll.u32 %v2418, 16
        %v2423 = vshrl.u32 %v2418, 16
        %vm2424 = vc.u32 %v2416, %v2420
        %v2425 = vsel %vm2424, 1, 0
        %v2426 = vadd.s32 %v2416, %v2420
        %v2427 = vadd.s32 %v2419, %v2425
        %vm2428 = vc.u32 %v2426, %v2422
        %v2429 = vsel %vm2428, 1, 0
        %v2430 = vadd.s32 %v2426, %v2422
        %v2431 = vadd.s32 %v2427, %v2429
        %v2432 = vadd.s32 %v2431, %v2421
        %v2433 = vadd.s32 %v2432, %v2423
        %v2434 = vmul.u32 %v2389, %v2380
        %v2435 = vadd.s32 %v2411, %v2430
        %vm2436 = vc.u32 %v2411, %v2430
        %v2437 = vadd.s32 %v2433, 1
        %v2438 = vsel %vm2436, %v2437, %v2433
        %v2439 = vadd.s32 %v2434, %v2438
        %v2440 = vadd.s32 %v2439, 536870912
        %v2441 = vshrl.u32 %v2440, 30
        %v2442 = vshll.u32 %v2441, 30
        %v2443 = vsub.s32 %v2439, %v2442
        %vm2444 = vcmp.lt.s32.totalorder %v2443, 0
        %v2445 = vsub.s32 0, %v2443
        %v2446 = vsel %vm2444, %v2445, %v2443
        %v2447 = vclz %v2446
        %v2448 = vsub.s32 %v2447, 2
        %vm2449 = vcmp.gt.s32.totalorder 0, %v2448
        %v2450 = vsel %vm2449, 0, %v2448
        %v2451 = vsub.s32 32, %v2450
        %v2452 = vshll.u32 %v2443, %v2450
        %v2453 = vshrl.u32 %v2435, %v2451
        %v2454 = vor.u32 %v2452, %v2453
        %v2455 = vsub.s32 4294967266, %v2450
        %v2456 = vadd.s32 %v2455, 127
        %v2457 = vshll.u32 %v2456, 23
        %v2458 = vor.u32 4788187, %v2457
        %v2459 = vand.u32 2147483647, %v2458
        %v2461 = vcvt.s32.f32 %v2454
        %v2462 = vmul.f32 %v2461, %v2459
        %v2463 = vxor.u32 %v2462, 2147483648
        %v2464 = vsel %vm2343, %v2463, %v2462
        %v2465 = vsub.s32 4, %v2441
        %v2466 = vsel %vm2343, %v2465, %v2441
        %v2467 = vsel %vm2342, %v1875, %v2464
        %v2468 = vsel %vm2342, 0, %v2466
        %v2469 = vmul.f32 %v2467, %v2467
        %v2470 = vmul.f32 %v2469, -0.001358992
        %v2471 = vadd.f32 %v2470, 0.041655596
        %v2472 = vmul.f32 %v2469, %v2471
        %v2473 = vadd.f32 %v2472, -0.4999988
        %v2474 = vmul.f32 %v2469, %v2473
        %v2475 = vadd.f32 1.0, %v2474
        %v2476 = vmul.f32 %v2467, %v2467
        %v2477 = vmul.f32 %v2476, -0.00019511016
        %v2478 = vadd.f32 %v2477, 0.008332121
        %v2479 = vmul.f32 %v2476, %v2478
        %v2480 = vadd.f32 %v2479, -0.16666654
        %v2481 = vmul.f32 %v2476, %v2480
        %v2482 = vadd.f32 %v2481, 1.0
        %v2483 = vmul.f32 %v2482, %v2467
        %vm2484 = vweird.f32 %v1875
        %v2485 = vadd.s32 %v2468, 3
        %v2486 = vand.u32 %v2485, 3
        %vm2487 = vcmp.lt.s32.totalorder %v2486, 2
        %vm2488 = vcmp.eq.s32.totalorder %v2486, 0
        %v2489 = vxor.u32 %v2483, 2147483648
        %v2490 = vsel %vm2488, %v2475, %v2489
        %vm2491 = vcmp.eq.s32.totalorder %v2486, 2
        %v2492 = vxor.u32 %v2475, 2147483648
        %v2493 = vsel %vm2491, %v2492, %v2483
        %v2494 = vsel %vm2487, %v2490, %v2493
        %v2495 = vsel %vm2484, nan, %v2494
        %v2496 = vmul.f32 %v2030, 0.1
        %v2497 = vmul.f32 %v2185, 0.1
        %v2498 = vmul.f32 %v2340, 0.1
        %v2499 = vmul.f32 %v2495, 0.1
        %v2500 = vld [vmem:[%s389] sm:$0xff]
        %v2501 = vld [vmem:[%s389 + $0x8] sm:$0xff]
        %v2502 = vld [vmem:[%s389 + $0x10] sm:$0xff]
        %v2503 = vld [vmem:[%s389 + $0x18] sm:$0xff]
        %v2504 = vadd.f32 %v2496, %v2500
        %v2505 = vadd.f32 %v2497, %v2501
        %v2506 = vadd.f32 %v2498, %v2502
        %v2507 = vadd.f32 %v2499, %v2503
        %2508 = vst [vmem:[%s356] sm:$0xff] %v2504
        %2509 = vst [vmem:[%s356 + $0x8] sm:$0xff] %v2505
        %2510 = vst [vmem:[%s356 + $0x10] sm:$0xff] %v2506
        %2511 = vst [vmem:[%s356 + $0x18] sm:$0xff] %v2507
        %v2512 = vand.u32 2147483647, %v1843
        %v2513 = vrcp.pop 1.0
        %v2514 = vsub.f32 1.0, %v2513
        %v2515 = vmul.f32 %v2513, %v2514
        %v2516 = vadd.f32 %v2513, %v2515
        %vm2517 = vweird.f32 %v2513
        %v2518 = vsel %vm2517, %v2513, %v2516
        %v2519 = vmul.f32 %v2512, %v2518
        %v2520 = vfloor.f32 %v2519
        %v2521 = vsub.f32 %v2512, %v2520
        %vm2522 = vcmp.eq.f32.partialorder %v2521, 1.0
        %v2523 = vsel %vm2522, 0.0, %v2521
        %v2524 = vand.u32 2147483647, %v2523
        %v2525 = vand.u32 %v1843, 2147483648
        %v2526 = vor.u32 %v2524, %v2525
        %vm2527 = vcmp.ne.f32.partialorder %v2526, 0.0
        %vm2528 = vcmp.lt.f32.partialorder %v2526, 0.0
        %vm2529 = vmand %vm2528, %vm2527
        %v2530 = vadd.f32 %v2526, 1.0
        %v2531 = vsel %vm2529, %v2530, %v2526
        %2533 = vrot.lane.b32.xlu0 %v2531, 1
        %v2534 = vpop.permute.xlu0 %2533
        %vm2536 = vcmask 7168
        %2537 = vst.msk [vmem:[#allocation2] sm:$0xff] %vm2536, %v2534
        %s2538 = sand.u32 %s187, 1
        %s2539 = scalar_lea.sflag [#allocation5], %s2538
        %s2540 = sand.u32 %s187, 1
        %s2541 = smul.addr %s2540, 32
        %s2542 = scalar_lea.vmem [#allocation8], %s2541
        // Predicated region
        $region53: #{tpu_custom_call.1} parent=39 // pred_check
          %p2543 = pneg %p197
        $region54: #{tpu_custom_call.1} parent=39 // pred_check_branch
          %2545 = sbr.rel (%p2543) target = $region56
        $region55: #{tpu_custom_call.1} parent=39 // pred_region
          %s2546 = smul.u32 2, %s26
          %s2547 = smul.u32 2, %s28
          %2549 = vsyncadd %s2539, 0
          %s2550 = smul.addr %s27, 2
          %s2551 = sadd.s32 %s2547, %s2550
          %s2552 = smul.addr %s2546, 2
          %s2553 = sadd.s32 %s2551, %s2552
          %s2554 = smul.addr %s2553, 8
          %s2555 = scalar_lea.hbm %s5, %s2554
          %s2556 = sshll.u32 %s2542, 4
          %s2557 = int_to_ptr.vmem [resolvable:$true] %s2556
          %s2558 = sshll.u32 %s2555, 4
          %s2559 = int_to_ptr.hbm [resolvable:$true] %s2558
          %2564 = dma.vmem_to_hbm [thread:$0]  %s2557, 512, %s2559, %s2539, 256, 256, 16
        $region56: #{tpu_custom_call.1} parent=39 // pred_fallthru
          _
      $region40: #{tpu_custom_call.1} parent=5 // pred_fallthru
        _
      %p2565 = scmp.le.s32.totalorder 2, %s16
      // Predicated region
      $region57: #{tpu_custom_call.1} parent=5 // pred_check
        %p2566 = pneg %p2565
      $region58: #{tpu_custom_call.1} parent=5 // pred_check_branch
        %2568 = sbr.rel (%p2566) target = $region60
      $region59: #{tpu_custom_call.1} parent=5 // pred_region
        %s2569 = ssub.s32 %s16, 2
        // Predicated region
        $region61: #{tpu_custom_call.1} parent=59 // pred_check
          %p2570 = pneg %p203
        $region62: #{tpu_custom_call.1} parent=59 // pred_check_branch
          %2572 = sbr.rel (%p2570) target = $region64
        $region63: #{tpu_custom_call.1} parent=59 // pred_region
          %s2573 = sand.u32 %s188, 1
          %s2574 = scalar_lea.sflag [#allocation5], %s2573
          %s2575 = sand.u32 %s188, 1
          %s2576 = smul.addr %s2575, 32
          %s2577 = scalar_lea.vmem [#allocation8], %s2576
          %2579 = dma.done %s2574, 512
        $region64: #{tpu_custom_call.1} parent=59 // pred_fallthru
          _
      $region60: #{tpu_custom_call.1} parent=5 // pred_fallthru
        _
    $region6: #{tpu_custom_call.1} parent=1 // loop_footer
      %s20 = sadd.s32 1, %s16
    $region7: #{tpu_custom_call.1} parent=1 // loop_footer_branch
      %15 = sbr.rel target = $region3
    $region8: #{tpu_custom_call.1} parent=1 // loop_exit
      _
    %2580 = vsyncpa [#allocation4], 1
    %s2581 = scalar_lea.sflag [#allocation4], 1
    %2582 = vsyncpa %s2581, 1
    %2583 = vsyncpa [#allocation7], 1
    %2584 = vsyncpa [#allocation5], 1
    %s2585 = scalar_lea.sflag [#allocation5], 1
    %2586 = vsyncpa %s2585, 1

</llo_original>
